<compile_context>
chip_gen: v7x
topology: tpu7x:2x2x1
jax: 0.10.0
libtpu: 0.0.40
codegen_flags: <defaults>
</compile_context>

<pallas_src>
import jax
import jax.numpy as jnp
import numpy as np
from jax.experimental import pallas as pl
from jax.experimental.pallas import tpu as pltpu

LN_EPS = 1e-5  # PyTorch nn.LayerNorm default


def _round_up(x, m):
    return (x + m - 1) // m * m


# ----------------------------------------------------------------------------
# Shared layout description (used by both the packer and the kernel builder)
# ----------------------------------------------------------------------------
def _layout(C, L, H):
    """Kernel-facing parameter layout: (vector rows, weight planes)."""
    vec, w = [], []
    v = lambda n, d: vec.append((n, d))
    W = lambda n, din, dout: w.append((n, din, dout))

    v("ln0_g", C); v("ln0_b", C)                                   # layer_norm0
    W("enc1_w", C, H[0]); v("enc1_b", H[0]); v("enc1_g", H[0]); v("enc1_bt", H[0])
    W("enc2_w", H[0], H[1]); v("enc2_b", H[1]); v("enc2_g", H[1]); v("enc2_bt", H[1])
    W("out_enc_w", H[2], L); v("out_enc_b", L)                     # out_encoder
    W("dec_w", H[1], C); v("dec_b", C)                             # decoder_dense1
    W("xae_w", C, H[2]); v("xae_b", H[2]); v("xae_g", H[2]); v("xae_bt", H[2])
    W("out_ae_w", H[2], L); v("out_ae_b", L)                       # out_ae_dense
    # x_ln gamma/beta split at the concat seam (x0-part / encoder-part)
    v("xln_gx", C); v("xln_ge", H[1]); v("xln_bx", C); v("xln_be", H[1])
    # first MLP-head weight split at the concat seam: cat@W == x0n@Wa + encn@Wb
    W("mlp0_wa", C, H[3]); W("mlp0_wb", H[1], H[3])
    v("mlp0_b", H[3]); v("mlp0_g", H[3]); v("mlp0_bt", H[3])
    for j in range(1, len(H) - 3):
        W(f"mlp{j}_w", H[j + 2], H[j + 3])
        v(f"mlp{j}_b", H[j + 3]); v(f"mlp{j}_g", H[j + 3]); v(f"mlp{j}_bt", H[j + 3])
    W("out_w", H[-1], L); v("out_b", L)                            # out_dense
    return vec, w


# ----------------------------------------------------------------------------
# Fused kernel (whole forward pass, packed params, packed lane-dense output)
# ----------------------------------------------------------------------------
def _make_kernel(C, L, H, vec_index, w_index, out_w):
    n_mlp = len(H) - 3
    f32 = jnp.float32

    def kernel(x_ref, vec_ref, w_ref, out_ref):
        def vec(name):
            r, d = vec_index[name]
            return vec_ref[r:r + 1, :d]                    # (1, d) f32, static slice

        def mm(a, name):
            k, din, dout = w_index[name]
            w = w_ref[k, :din, :dout]                      # static plane slice
            return jnp.dot(a.astype(w.dtype), w, preferred_element_type=f32)

        def ln(y, gname, bname):
            # single-pass LayerNorm stats (biased variance, eps = 1e-5)
            d = y.shape[-1]
            s1 = jnp.sum(y, -1, keepdims=True)
            s2 = jnp.sum(y * y, -1, keepdims=True)
            mean = s1 / d
            var = s2 / d - mean * mean
            return (y - mean) * jax.lax.rsqrt(var + LN_EPS) * vec(gname) + vec(bname)

        def silu(y):
            return y * jax.nn.sigmoid(y)

        x = x_ref[...].astype(f32)

        # x0 = layer_norm0(x)   (gaussian noise = identity in eval mode)
        x0 = ln(x, "ln0_g", "ln0_b")

        # encoder: (Linear -> LN -> SiLU) x 2
        enc = silu(ln(mm(x0, "enc1_w") + vec("enc1_b"), "enc1_g", "enc1_bt"))
        enc = silu(ln(mm(enc, "enc2_w") + vec("enc2_b"), "enc2_g", "enc2_bt"))

        # out_enc = sigmoid(out_encoder(encoder))
        out_enc = jax.nn.sigmoid(mm(enc, "out_enc_w") + vec("out_enc_b"))

        # decoder = decoder_dense1(encoder)   (dropout = identity in eval)
        dec = mm(enc, "dec_w") + vec("dec_b")

        # x_ae = SiLU(LN(x_ae_dense(decoder)))
        x_ae = silu(ln(mm(dec, "xae_w") + vec("xae_b"), "xae_g", "xae_bt"))

        # out_ae = sigmoid(out_ae_dense(x_ae))
        out_ae = jax.nn.sigmoid(mm(x_ae, "out_ae_w") + vec("out_ae_b"))

        # LN(cat([x0, enc], dim=1)) without materializing the concat:
        # joint single-pass mean/var from the two halves, split gamma/beta.
        csize = C + H[1]
        s1 = jnp.sum(x0, -1, keepdims=True) + jnp.sum(enc, -1, keepdims=True)
        s2 = (jnp.sum(x0 * x0, -1, keepdims=True) +
              jnp.sum(enc * enc, -1, keepdims=True))
        mean = s1 / csize
        var = s2 / csize - mean * mean
        inv = jax.lax.rsqrt(var + LN_EPS)
        x0n = (x0 - mean) * inv * vec("xln_gx") + vec("xln_bx")
        encn = (enc - mean) * inv * vec("xln_ge") + vec("xln_be")

        # MLP head: first block uses the split weight (cat@W == x0n@Wa + encn@Wb)
        h = silu(ln(mm(x0n, "mlp0_wa") + mm(encn, "mlp0_wb") + vec("mlp0_b"),
                    "mlp0_g", "mlp0_bt"))
        for j in range(1, n_mlp):
            h = silu(ln(mm(h, f"mlp{j}_w") + vec(f"mlp{j}_b"),
                        f"mlp{j}_g", f"mlp{j}_bt"))

        # out = sigmoid(out_dense(h))
        out = jax.nn.sigmoid(mm(h, "out_w") + vec("out_b"))

        # Pack all four outputs into one lane-dense (tile_b, out_w) slab and do
        # a single unmasked store -> single dense writeback DMA stream.
        tb = x.shape[0]
        pieces = [out_enc, dec, out_ae, out]
        pad_w = out_w - (3 * L + C)
        if pad_w:
            pieces.append(jnp.zeros((tb, pad_w), f32))
        out_ref[...] = jnp.concatenate(pieces, axis=-1)

    return kernel


# ----------------------------------------------------------------------------
# Batch-tile heuristic: large tiles (amortize per-step overhead) but >=2 tiles
# whenever possible so v7x's two TensorCores can split the "parallel" axis.
# ----------------------------------------------------------------------------
def _pick_tile_b(batch):
    best = batch
    for cand in range(8, min(batch // 2, 1024) + 1, 8):
        if batch % cand == 0:
            best = cand
    return best


# ----------------------------------------------------------------------------
# Wrapper: single pallas_call, batch-tiled grid, two resident parameter slabs
# ----------------------------------------------------------------------------
def make_forward(num_columns, num_labels, hidden_units, batch, tile_b=None):
    C, L, H = num_columns, num_labels, hidden_units
    assert len(H) >= 4, "need at least one MLP-head block"
    assert H[1] == H[2], ("CustomModel applies out_encoder (Linear(hidden[2], L)) "
                          "to the encoder output (hidden[1]); they must match.")

    vec_entries, w_entries = _layout(C, L, H)
    vec_index = {n: (r, d) for r, (n, d) in enumerate(vec_entries)}
    w_index = {n: (k, din, dout) for k, (n, din, dout) in enumerate(w_entries)}

    out_raw = 3 * L + C                       # out_enc | decoder | out_ae | out
    out_w = _round_up(out_raw, 128)           # lane-dense packed output width

    if tile_b is None:
        tile_b = _pick_tile_b(batch)
    assert batch % tile_b == 0, "batch must be a multiple of the batch tile"

    kernel = _make_kernel(C, L, H, vec_index, w_index, out_w)

    flops = 2 * batch * sum(din * dout for _, din, dout in w_entries)
    transcendentals = batch * (sum(H) + 3 * L)   # SiLU/sigmoid exps (approx.)

    def forward(vec_slab, w_slab, x):
        grid = (batch // tile_b,)
        in_specs = [
            pl.BlockSpec((tile_b, C), lambda i: (i, 0)),
            # Constant block index -> parameter slabs are DMA'd once and stay
            # resident in VMEM across all batch tiles.
            pl.BlockSpec(vec_slab.shape, lambda i: (0, 0)),
            pl.BlockSpec(w_slab.shape, lambda i: (0, 0, 0)),
        ]
        out_specs = pl.BlockSpec((tile_b, out_w), lambda i: (i, 0))
        out_shape = jax.ShapeDtypeStruct((batch, out_w), jnp.float32)

        param_bytes = (vec_slab.size * vec_slab.dtype.itemsize
                       + w_slab.size * w_slab.dtype.itemsize)
        cost = pl.CostEstimate(
            flops=int(flops),
            transcendentals=int(transcendentals),
            bytes_accessed=int(batch * (C + out_w) * 4 + param_bytes),
        )

        # Rough VMEM need (double-buffered in/out blocks + resident slabs);
        # only raise the scoped limit when a large tile actually needs it.
        vmem_need = (2 * tile_b * (C + out_w) * 4 + param_bytes
                     + 2 * tile_b * out_w * 4)
        vmem_limit = None
        if vmem_need > 12 * 1024 * 1024:
            vmem_limit = int(min(vmem_need * 2, 48 * 1024 * 1024))

        packed = pl.pallas_call(
            kernel,
            out_shape=out_shape,
            grid=grid,
            in_specs=in_specs,
            out_specs=out_specs,
            compiler_params=pltpu.CompilerParams(
                # Batch tiles are independent: v7x's two TensorCores split them.
                dimension_semantics=("parallel",),
                vmem_limit_bytes=vmem_limit,
            ),
            cost_estimate=cost,
        )(x, vec_slab, w_slab)

        # Wrapper-side slicing of the packed lane-dense output slab.
        out_enc = packed[:, :L]
        decoder = packed[:, L:L + C]
        out_ae = packed[:, L + C:L + C + L]
        out = packed[:, L + C + L:L + C + 2 * L]
        return out_enc, decoder, out_ae, out

    return forward


# ----------------------------------------------------------------------------
# Parameter construction (natural per-layer f32 dict) and slab packing
# ----------------------------------------------------------------------------
def _linear(key, din, dout):
    k1, k2 = jax.random.split(key)
    w = jax.random.normal(k1, (din, dout), jnp.float32) * 0.05    # [in, out]
    b = jax.random.normal(k2, (dout,), jnp.float32) * 0.01
    return w, b


def _ln_params(key, d):
    k1, k2 = jax.random.split(key)
    g = 1.0 + 0.1 * jax.random.normal(k1, (d,), jnp.float32)
    b = 0.05 * jax.random.normal(k2, (d,), jnp.float32)
    return g, b


def make_params(key, num_columns, num_labels, hidden_units):
    C, L, H = num_columns, num_labels, hidden_units
    assert len(H) >= 4 and H[1] == H[2]
    concat = C + H[1]
    keys = iter(jax.random.split(key, 64))
    p = {}
    p["ln0_g"], p["ln0_b"] = _ln_params(next(keys), C)
    p["enc1_w"], p["enc1_b"] = _linear(next(keys), C, H[0])
    p["enc1_g"], p["enc1_bt"] = _ln_params(next(keys), H[0])
    p["enc2_w"], p["enc2_b"] = _linear(next(keys), H[0], H[1])
    p["enc2_g"], p["enc2_bt"] = _ln_params(next(keys), H[1])
    p["out_enc_w"], p["out_enc_b"] = _linear(next(keys), H[2], L)
    p["dec_w"], p["dec_b"] = _linear(next(keys), H[1], C)
    p["xae_w"], p["xae_b"] = _linear(next(keys), C, H[2])
    p["xae_g"], p["xae_bt"] = _ln_params(next(keys), H[2])
    p["out_ae_w"], p["out_ae_b"] = _linear(next(keys), H[2], L)
    p["xln_g"], p["xln_b"] = _ln_params(next(keys), concat)
    p["mlp0_w"], p["mlp0_b"] = _linear(next(keys), concat, H[3])
    p["mlp0_g"], p["mlp0_bt"] = _ln_params(next(keys), H[3])
    for j in range(1, len(H) - 3):
        p[f"mlp{j}_w"], p[f"mlp{j}_b"] = _linear(next(keys), H[j + 2], H[j + 3])
        p[f"mlp{j}_g"], p[f"mlp{j}_bt"] = _ln_params(next(keys), H[j + 3])
    p["out_w"], p["out_b"] = _linear(next(keys), H[-1], L)
    return p


def pack_params(params, num_columns, num_labels, hidden_units,
                w_dtype=jnp.bfloat16):
    """Pack all parameters into two VMEM-resident slabs (done once, host side)."""
    C, L, H = num_columns, num_labels, hidden_units
    vec_entries, w_entries = _layout(C, L, H)
    d_pad = _round_up(max(d for _, d in vec_entries), 128)
    in_pad = _round_up(max(din for _, din, _ in w_entries), 16)
    out_pad = _round_up(max(dout for _, _, dout in w_entries), 128)

    special_vec = {
        "xln_gx": params["xln_g"][:C], "xln_ge": params["xln_g"][C:],
        "xln_bx": params["xln_b"][:C], "xln_be": params["xln_b"][C:],
    }
    special_w = {
        "mlp0_wa": params["mlp0_w"][:C, :], "mlp0_wb": params["mlp0_w"][C:, :],
    }

    vec_np = np.zeros((len(vec_entries), d_pad), np.float32)
    for r, (name, d) in enumerate(vec_entries):
        val = special_vec.get(name, params.get(name))
        vec_np[r, :d] = np.asarray(val).reshape(-1)

    w_np = np.zeros((len(w_entries), in_pad, out_pad), np.float32)
    for k, (name, din, dout) in enumerate(w_entries):
        val = special_w.get(name, params.get(name))
        w_np[k, :din, :dout] = np.asarray(val)

    return jnp.asarray(vec_np), jnp.asarray(w_np, dtype=w_dtype)


# ----------------------------------------------------------------------------
# Pure-JAX reference (eval-mode semantics) for correctness checks
# ----------------------------------------------------------------------------
def reference_forward(p, x, num_columns, num_labels, hidden_units):
    H = hidden_units

    def ln(y, g, b):
        m = jnp.mean(y, -1, keepdims=True)
        v = jnp.mean((y - m) ** 2, -1, keepdims=True)
        return (y - m) / jnp.sqrt(v + LN_EPS) * g + b

    silu = lambda y: y * jax.nn.sigmoid(y)

    x0 = ln(x, p["ln0_g"], p["ln0_b"])
    enc = silu(ln(x0 @ p["enc1_w"] + p["enc1_b"], p["enc1_g"], p["enc1_bt"]))
    enc = silu(ln(enc @ p["enc2_w"] + p["enc2_b"], p["enc2_g"], p["enc2_bt"]))
    out_enc = jax.nn.sigmoid(enc @ p["out_enc_w"] + p["out_enc_b"])
    dec = enc @ p["dec_w"] + p["dec_b"]
    x_ae = silu(ln(dec @ p["xae_w"] + p["xae_b"], p["xae_g"], p["xae_bt"]))
    out_ae = jax.nn.sigmoid(x_ae @ p["out_ae_w"] + p["out_ae_b"])
    xc = ln(jnp.concatenate([x0, enc], axis=1), p["xln_g"], p["xln_b"])
    h = silu(ln(xc @ p["mlp0_w"] + p["mlp0_b"], p["mlp0_g"], p["mlp0_bt"]))
    for j in range(1, len(H) - 3):
        h = silu(ln(h @ p[f"mlp{j}_w"] + p[f"mlp{j}_b"],
                    p[f"mlp{j}_g"], p[f"mlp{j}_bt"]))
    out = jax.nn.sigmoid(h @ p["out_w"] + p["out_b"])
    return out_enc, dec, out_ae, out


# ----------------------------------------------------------------------------
if __name__ == "__main__":
    # Small config consistent with the module (hidden[1] must equal hidden[2]).
    num_columns = 32
    num_labels = 5
    hidden_units = [64, 48, 48, 40, 24]
    batch = 16  # -> tile_b=8, grid=(2,): exercises the multi-tile "parallel" path

    key = jax.random.PRNGKey(0)
    k_params, k_x = jax.random.split(key)
    params = make_params(k_params, num_columns, num_labels, hidden_units)
    x = jax.random.normal(k_x, (batch, num_columns), jnp.float32)

    forward = jax.jit(make_forward(num_columns, num_labels, hidden_units, batch))

    # f32 weight slab: tight correctness check of the kernel math.
    vec32, w32 = pack_params(params, num_columns, num_labels, hidden_units,
                             w_dtype=jnp.float32)
    outs32 = forward(vec32, w32, x)
    jax.block_until_ready(outs32)

    # bf16 weight slab (fast path on v5e/v6e/v7x MXU): looser tolerance.
    vec16, w16 = pack_params(params, num_columns, num_labels, hidden_units,
                             w_dtype=jnp.bfloat16)
    outs16 = forward(vec16, w16, x)
    jax.block_until_ready(outs16)

    out_enc, decoder, out_ae, out = outs32
    assert out_enc.shape == (batch, num_labels)
    assert decoder.shape == (batch, num_columns)
    assert out_ae.shape == (batch, num_labels)
    assert out.shape == (batch, num_labels)

    refs = reference_forward(params, x, num_columns, num_labels, hidden_units)
    for got, want in zip(outs32, refs):
        assert jnp.allclose(got, want, atol=2e-3, rtol=2e-3), float(
            jnp.max(jnp.abs(got - want)))
    for got, want in zip(outs16, refs):
        assert jnp.allclose(got, want, atol=5e-2, rtol=5e-2), float(
            jnp.max(jnp.abs(got - want)))

    print("KERNEL_OK")
</pallas_src>

<mosaic_0001>
module attributes {stable_mosaic.version = 11 : i64} {
  func.func @kernel(%arg0: i32, %arg1: memref<8x32xf32, #tpu.memory_space<vmem>>, %arg2: memref<25x128xf32, #tpu.memory_space<vmem>>, %arg3: memref<10x64x128xf32, #tpu.memory_space<vmem>>, %arg4: memref<8x128xf32, #tpu.memory_space<vmem>>) attributes {dimension_semantics = [#tpu.dimension_semantics<parallel>], iteration_bounds = array<i64: 2>, scalar_prefetch = 0 : i64, scratch_operands = 0 : i64, tpu.core_type = #tpu.core_type<tc>, window_params = [{transform_indices = @transform_0, window_bounds = array<i64: 8, 32>}, {pipeline_mode = #tpu.pipeline_mode<synchronous>, transform_indices = @transform_1, window_bounds = array<i64: 25, 128>}, {pipeline_mode = #tpu.pipeline_mode<synchronous>, transform_indices = @transform_2, window_bounds = array<i64: 10, 64, 128>}, {transform_indices = @transform_3, window_bounds = array<i64: 8, 128>}]} {
    %c0 = arith.constant 0 : index
    %c0_0 = arith.constant 0 : index
    %0 = vector.load %arg1[%c0, %c0_0] : memref<8x32xf32, #tpu.memory_space<vmem>>, vector<8x32xf32>
    %cst = arith.constant dense<0.000000e+00> : vector<8xf32>
    %1 = vector.multi_reduction <add>, %0, %cst [1] : vector<8x32xf32> to vector<8xf32>
    %2 = vector.shape_cast %1 : vector<8xf32> to vector<8x1xf32>
    %3 = arith.mulf %0, %0 : vector<8x32xf32>
    %cst_1 = arith.constant dense<0.000000e+00> : vector<8xf32>
    %4 = vector.multi_reduction <add>, %3, %cst_1 [1] : vector<8x32xf32> to vector<8xf32>
    %5 = vector.shape_cast %4 : vector<8xf32> to vector<8x1xf32>
    %cst_2 = arith.constant 3.200000e+01 : f32
    %6 = vector.broadcast %cst_2 : f32 to vector<8x1xf32>
    %7 = arith.divf %2, %6 : vector<8x1xf32>
    %cst_3 = arith.constant 3.200000e+01 : f32
    %8 = vector.broadcast %cst_3 : f32 to vector<8x1xf32>
    %9 = arith.divf %5, %8 : vector<8x1xf32>
    %10 = arith.mulf %7, %7 : vector<8x1xf32>
    %11 = arith.subf %9, %10 : vector<8x1xf32>
    %12 = vector.broadcast %7 : vector<8x1xf32> to vector<8x32xf32>
    %13 = arith.subf %0, %12 : vector<8x32xf32>
    %cst_4 = arith.constant 9.99999974E-6 : f32
    %14 = vector.broadcast %cst_4 : f32 to vector<8x1xf32>
    %15 = arith.addf %11, %14 : vector<8x1xf32>
    %16 = math.rsqrt %15 : vector<8x1xf32>
    %17 = vector.broadcast %16 : vector<8x1xf32> to vector<8x32xf32>
    %18 = arith.mulf %13, %17 : vector<8x32xf32>
    %c0_5 = arith.constant 0 : index
    %c0_6 = arith.constant 0 : index
    %19 = vector.load %arg2[%c0_5, %c0_6] : memref<25x128xf32, #tpu.memory_space<vmem>>, vector<1x32xf32>
    %20 = vector.broadcast %19 : vector<1x32xf32> to vector<8x32xf32>
    %21 = arith.mulf %18, %20 : vector<8x32xf32>
    %c1 = arith.constant 1 : index
    %c0_7 = arith.constant 0 : index
    %22 = vector.load %arg2[%c1, %c0_7] : memref<25x128xf32, #tpu.memory_space<vmem>>, vector<1x32xf32>
    %23 = vector.broadcast %22 : vector<1x32xf32> to vector<8x32xf32>
    %24 = arith.addf %21, %23 : vector<8x32xf32>
    %c0_8 = arith.constant 0 : index
    %c0_9 = arith.constant 0 : index
    %c0_10 = arith.constant 0 : index
    %25 = vector.load %arg3[%c0_8, %c0_9, %c0_10] : memref<10x64x128xf32, #tpu.memory_space<vmem>>, vector<1x32x64xf32>
    %26 = vector.shape_cast %25 : vector<1x32x64xf32> to vector<32x64xf32>
    %cst_11 = arith.constant dense<0.000000e+00> : vector<8x64xf32>
    %27 = tpu.matmul %24, %26, %cst_11 {dimension_numbers = #tpu.dot_dimension_numbers<[1], [0], [0], [1], [0, 0, 1, 1], [], []>} : vector<8x32xf32>, vector<32x64xf32>, vector<8x64xf32> -> vector<8x64xf32>
    %c2 = arith.constant 2 : index
    %c0_12 = arith.constant 0 : index
    %28 = vector.load %arg2[%c2, %c0_12] : memref<25x128xf32, #tpu.memory_space<vmem>>, vector<1x64xf32>
    %29 = vector.broadcast %28 : vector<1x64xf32> to vector<8x64xf32>
    %30 = arith.addf %27, %29 : vector<8x64xf32>
    %cst_13 = arith.constant dense<0.000000e+00> : vector<8xf32>
    %31 = vector.multi_reduction <add>, %30, %cst_13 [1] : vector<8x64xf32> to vector<8xf32>
    %32 = vector.shape_cast %31 : vector<8xf32> to vector<8x1xf32>
    %33 = arith.mulf %30, %30 : vector<8x64xf32>
    %cst_14 = arith.constant dense<0.000000e+00> : vector<8xf32>
    %34 = vector.multi_reduction <add>, %33, %cst_14 [1] : vector<8x64xf32> to vector<8xf32>
    %35 = vector.shape_cast %34 : vector<8xf32> to vector<8x1xf32>
    %cst_15 = arith.constant 6.400000e+01 : f32
    %36 = vector.broadcast %cst_15 : f32 to vector<8x1xf32>
    %37 = arith.divf %32, %36 : vector<8x1xf32>
    %cst_16 = arith.constant 6.400000e+01 : f32
    %38 = vector.broadcast %cst_16 : f32 to vector<8x1xf32>
    %39 = arith.divf %35, %38 : vector<8x1xf32>
    %40 = arith.mulf %37, %37 : vector<8x1xf32>
    %41 = arith.subf %39, %40 : vector<8x1xf32>
    %42 = vector.broadcast %37 : vector<8x1xf32> to vector<8x64xf32>
    %43 = arith.subf %30, %42 : vector<8x64xf32>
    %cst_17 = arith.constant 9.99999974E-6 : f32
    %44 = vector.broadcast %cst_17 : f32 to vector<8x1xf32>
    %45 = arith.addf %41, %44 : vector<8x1xf32>
    %46 = math.rsqrt %45 : vector<8x1xf32>
    %47 = vector.broadcast %46 : vector<8x1xf32> to vector<8x64xf32>
    %48 = arith.mulf %43, %47 : vector<8x64xf32>
    %c3 = arith.constant 3 : index
    %c0_18 = arith.constant 0 : index
    %49 = vector.load %arg2[%c3, %c0_18] : memref<25x128xf32, #tpu.memory_space<vmem>>, vector<1x64xf32>
    %50 = vector.broadcast %49 : vector<1x64xf32> to vector<8x64xf32>
    %51 = arith.mulf %48, %50 : vector<8x64xf32>
    %c4 = arith.constant 4 : index
    %c0_19 = arith.constant 0 : index
    %52 = vector.load %arg2[%c4, %c0_19] : memref<25x128xf32, #tpu.memory_space<vmem>>, vector<1x64xf32>
    %53 = vector.broadcast %52 : vector<1x64xf32> to vector<8x64xf32>
    %54 = arith.addf %51, %53 : vector<8x64xf32>
    %55 = arith.negf %54 : vector<8x64xf32>
    %56 = math.exp %55 : vector<8x64xf32>
    %cst_20 = arith.constant 1.000000e+00 : f32
    %57 = vector.broadcast %cst_20 : f32 to vector<8x64xf32>
    %58 = arith.addf %57, %56 : vector<8x64xf32>
    %59 = arith.divf %57, %58 : vector<8x64xf32>
    %60 = arith.mulf %54, %59 : vector<8x64xf32>
    %c1_21 = arith.constant 1 : index
    %c0_22 = arith.constant 0 : index
    %c0_23 = arith.constant 0 : index
    %61 = vector.load %arg3[%c1_21, %c0_22, %c0_23] : memref<10x64x128xf32, #tpu.memory_space<vmem>>, vector<1x64x48xf32>
    %62 = vector.shape_cast %61 : vector<1x64x48xf32> to vector<64x48xf32>
    %cst_24 = arith.constant dense<0.000000e+00> : vector<8x48xf32>
    %63 = tpu.matmul %60, %62, %cst_24 {dimension_numbers = #tpu.dot_dimension_numbers<[1], [0], [0], [1], [0, 0, 1, 1], [], []>} : vector<8x64xf32>, vector<64x48xf32>, vector<8x48xf32> -> vector<8x48xf32>
    %c5 = arith.constant 5 : index
    %c0_25 = arith.constant 0 : index
    %64 = vector.load %arg2[%c5, %c0_25] : memref<25x128xf32, #tpu.memory_space<vmem>>, vector<1x48xf32>
    %65 = vector.broadcast %64 : vector<1x48xf32> to vector<8x48xf32>
    %66 = arith.addf %63, %65 : vector<8x48xf32>
    %cst_26 = arith.constant dense<0.000000e+00> : vector<8xf32>
    %67 = vector.multi_reduction <add>, %66, %cst_26 [1] : vector<8x48xf32> to vector<8xf32>
    %68 = vector.shape_cast %67 : vector<8xf32> to vector<8x1xf32>
    %69 = arith.mulf %66, %66 : vector<8x48xf32>
    %cst_27 = arith.constant dense<0.000000e+00> : vector<8xf32>
    %70 = vector.multi_reduction <add>, %69, %cst_27 [1] : vector<8x48xf32> to vector<8xf32>
    %71 = vector.shape_cast %70 : vector<8xf32> to vector<8x1xf32>
    %cst_28 = arith.constant 4.800000e+01 : f32
    %72 = vector.broadcast %cst_28 : f32 to vector<8x1xf32>
    %73 = arith.divf %68, %72 : vector<8x1xf32>
    %cst_29 = arith.constant 4.800000e+01 : f32
    %74 = vector.broadcast %cst_29 : f32 to vector<8x1xf32>
    %75 = arith.divf %71, %74 : vector<8x1xf32>
    %76 = arith.mulf %73, %73 : vector<8x1xf32>
    %77 = arith.subf %75, %76 : vector<8x1xf32>
    %78 = vector.broadcast %73 : vector<8x1xf32> to vector<8x48xf32>
    %79 = arith.subf %66, %78 : vector<8x48xf32>
    %cst_30 = arith.constant 9.99999974E-6 : f32
    %80 = vector.broadcast %cst_30 : f32 to vector<8x1xf32>
    %81 = arith.addf %77, %80 : vector<8x1xf32>
    %82 = math.rsqrt %81 : vector<8x1xf32>
    %83 = vector.broadcast %82 : vector<8x1xf32> to vector<8x48xf32>
    %84 = arith.mulf %79, %83 : vector<8x48xf32>
    %c6 = arith.constant 6 : index
    %c0_31 = arith.constant 0 : index
    %85 = vector.load %arg2[%c6, %c0_31] : memref<25x128xf32, #tpu.memory_space<vmem>>, vector<1x48xf32>
    %86 = vector.broadcast %85 : vector<1x48xf32> to vector<8x48xf32>
    %87 = arith.mulf %84, %86 : vector<8x48xf32>
    %c7 = arith.constant 7 : index
    %c0_32 = arith.constant 0 : index
    %88 = vector.load %arg2[%c7, %c0_32] : memref<25x128xf32, #tpu.memory_space<vmem>>, vector<1x48xf32>
    %89 = vector.broadcast %88 : vector<1x48xf32> to vector<8x48xf32>
    %90 = arith.addf %87, %89 : vector<8x48xf32>
    %91 = arith.negf %90 : vector<8x48xf32>
    %92 = math.exp %91 : vector<8x48xf32>
    %cst_33 = arith.constant 1.000000e+00 : f32
    %93 = vector.broadcast %cst_33 : f32 to vector<8x48xf32>
    %94 = arith.addf %93, %92 : vector<8x48xf32>
    %95 = arith.divf %93, %94 : vector<8x48xf32>
    %96 = arith.mulf %90, %95 : vector<8x48xf32>
    %c2_34 = arith.constant 2 : index
    %c0_35 = arith.constant 0 : index
    %c0_36 = arith.constant 0 : index
    %97 = vector.load %arg3[%c2_34, %c0_35, %c0_36] : memref<10x64x128xf32, #tpu.memory_space<vmem>>, vector<1x48x5xf32>
    %98 = vector.shape_cast %97 : vector<1x48x5xf32> to vector<48x5xf32>
    %cst_37 = arith.constant dense<0.000000e+00> : vector<8x5xf32>
    %99 = tpu.matmul %96, %98, %cst_37 {dimension_numbers = #tpu.dot_dimension_numbers<[1], [0], [0], [1], [0, 0, 1, 1], [], []>} : vector<8x48xf32>, vector<48x5xf32>, vector<8x5xf32> -> vector<8x5xf32>
    %c8 = arith.constant 8 : index
    %c0_38 = arith.constant 0 : index
    %100 = vector.load %arg2[%c8, %c0_38] : memref<25x128xf32, #tpu.memory_space<vmem>>, vector<1x5xf32>
    %101 = vector.broadcast %100 : vector<1x5xf32> to vector<8x5xf32>
    %102 = arith.addf %99, %101 : vector<8x5xf32>
    %103 = arith.negf %102 : vector<8x5xf32>
    %104 = math.exp %103 : vector<8x5xf32>
    %cst_39 = arith.constant 1.000000e+00 : f32
    %105 = vector.broadcast %cst_39 : f32 to vector<8x5xf32>
    %106 = arith.addf %105, %104 : vector<8x5xf32>
    %107 = arith.divf %105, %106 : vector<8x5xf32>
    %c3_40 = arith.constant 3 : index
    %c0_41 = arith.constant 0 : index
    %c0_42 = arith.constant 0 : index
    %108 = vector.load %arg3[%c3_40, %c0_41, %c0_42] : memref<10x64x128xf32, #tpu.memory_space<vmem>>, vector<1x48x32xf32>
    %109 = vector.shape_cast %108 : vector<1x48x32xf32> to vector<48x32xf32>
    %cst_43 = arith.constant dense<0.000000e+00> : vector<8x32xf32>
    %110 = tpu.matmul %96, %109, %cst_43 {dimension_numbers = #tpu.dot_dimension_numbers<[1], [0], [0], [1], [0, 0, 1, 1], [], []>} : vector<8x48xf32>, vector<48x32xf32>, vector<8x32xf32> -> vector<8x32xf32>
    %c9 = arith.constant 9 : index
    %c0_44 = arith.constant 0 : index
    %111 = vector.load %arg2[%c9, %c0_44] : memref<25x128xf32, #tpu.memory_space<vmem>>, vector<1x32xf32>
    %112 = vector.broadcast %111 : vector<1x32xf32> to vector<8x32xf32>
    %113 = arith.addf %110, %112 : vector<8x32xf32>
    %c4_45 = arith.constant 4 : index
    %c0_46 = arith.constant 0 : index
    %c0_47 = arith.constant 0 : index
    %114 = vector.load %arg3[%c4_45, %c0_46, %c0_47] : memref<10x64x128xf32, #tpu.memory_space<vmem>>, vector<1x32x48xf32>
    %115 = vector.shape_cast %114 : vector<1x32x48xf32> to vector<32x48xf32>
    %cst_48 = arith.constant dense<0.000000e+00> : vector<8x48xf32>
    %116 = tpu.matmul %113, %115, %cst_48 {dimension_numbers = #tpu.dot_dimension_numbers<[1], [0], [0], [1], [0, 0, 1, 1], [], []>} : vector<8x32xf32>, vector<32x48xf32>, vector<8x48xf32> -> vector<8x48xf32>
    %c10 = arith.constant 10 : index
    %c0_49 = arith.constant 0 : index
    %117 = vector.load %arg2[%c10, %c0_49] : memref<25x128xf32, #tpu.memory_space<vmem>>, vector<1x48xf32>
    %118 = vector.broadcast %117 : vector<1x48xf32> to vector<8x48xf32>
    %119 = arith.addf %116, %118 : vector<8x48xf32>
    %cst_50 = arith.constant dense<0.000000e+00> : vector<8xf32>
    %120 = vector.multi_reduction <add>, %119, %cst_50 [1] : vector<8x48xf32> to vector<8xf32>
    %121 = vector.shape_cast %120 : vector<8xf32> to vector<8x1xf32>
    %122 = arith.mulf %119, %119 : vector<8x48xf32>
    %cst_51 = arith.constant dense<0.000000e+00> : vector<8xf32>
    %123 = vector.multi_reduction <add>, %122, %cst_51 [1] : vector<8x48xf32> to vector<8xf32>
    %124 = vector.shape_cast %123 : vector<8xf32> to vector<8x1xf32>
    %cst_52 = arith.constant 4.800000e+01 : f32
    %125 = vector.broadcast %cst_52 : f32 to vector<8x1xf32>
    %126 = arith.divf %121, %125 : vector<8x1xf32>
    %cst_53 = arith.constant 4.800000e+01 : f32
    %127 = vector.broadcast %cst_53 : f32 to vector<8x1xf32>
    %128 = arith.divf %124, %127 : vector<8x1xf32>
    %129 = arith.mulf %126, %126 : vector<8x1xf32>
    %130 = arith.subf %128, %129 : vector<8x1xf32>
    %131 = vector.broadcast %126 : vector<8x1xf32> to vector<8x48xf32>
    %132 = arith.subf %119, %131 : vector<8x48xf32>
    %cst_54 = arith.constant 9.99999974E-6 : f32
    %133 = vector.broadcast %cst_54 : f32 to vector<8x1xf32>
    %134 = arith.addf %130, %133 : vector<8x1xf32>
    %135 = math.rsqrt %134 : vector<8x1xf32>
    %136 = vector.broadcast %135 : vector<8x1xf32> to vector<8x48xf32>
    %137 = arith.mulf %132, %136 : vector<8x48xf32>
    %c11 = arith.constant 11 : index
    %c0_55 = arith.constant 0 : index
    %138 = vector.load %arg2[%c11, %c0_55] : memref<25x128xf32, #tpu.memory_space<vmem>>, vector<1x48xf32>
    %139 = vector.broadcast %138 : vector<1x48xf32> to vector<8x48xf32>
    %140 = arith.mulf %137, %139 : vector<8x48xf32>
    %c12 = arith.constant 12 : index
    %c0_56 = arith.constant 0 : index
    %141 = vector.load %arg2[%c12, %c0_56] : memref<25x128xf32, #tpu.memory_space<vmem>>, vector<1x48xf32>
    %142 = vector.broadcast %141 : vector<1x48xf32> to vector<8x48xf32>
    %143 = arith.addf %140, %142 : vector<8x48xf32>
    %144 = arith.negf %143 : vector<8x48xf32>
    %145 = math.exp %144 : vector<8x48xf32>
    %cst_57 = arith.constant 1.000000e+00 : f32
    %146 = vector.broadcast %cst_57 : f32 to vector<8x48xf32>
    %147 = arith.addf %146, %145 : vector<8x48xf32>
    %148 = arith.divf %146, %147 : vector<8x48xf32>
    %149 = arith.mulf %143, %148 : vector<8x48xf32>
    %c5_58 = arith.constant 5 : index
    %c0_59 = arith.constant 0 : index
    %c0_60 = arith.constant 0 : index
    %150 = vector.load %arg3[%c5_58, %c0_59, %c0_60] : memref<10x64x128xf32, #tpu.memory_space<vmem>>, vector<1x48x5xf32>
    %151 = vector.shape_cast %150 : vector<1x48x5xf32> to vector<48x5xf32>
    %cst_61 = arith.constant dense<0.000000e+00> : vector<8x5xf32>
    %152 = tpu.matmul %149, %151, %cst_61 {dimension_numbers = #tpu.dot_dimension_numbers<[1], [0], [0], [1], [0, 0, 1, 1], [], []>} : vector<8x48xf32>, vector<48x5xf32>, vector<8x5xf32> -> vector<8x5xf32>
    %c13 = arith.constant 13 : index
    %c0_62 = arith.constant 0 : index
    %153 = vector.load %arg2[%c13, %c0_62] : memref<25x128xf32, #tpu.memory_space<vmem>>, vector<1x5xf32>
    %154 = vector.broadcast %153 : vector<1x5xf32> to vector<8x5xf32>
    %155 = arith.addf %152, %154 : vector<8x5xf32>
    %156 = arith.negf %155 : vector<8x5xf32>
    %157 = math.exp %156 : vector<8x5xf32>
    %cst_63 = arith.constant 1.000000e+00 : f32
    %158 = vector.broadcast %cst_63 : f32 to vector<8x5xf32>
    %159 = arith.addf %158, %157 : vector<8x5xf32>
    %160 = arith.divf %158, %159 : vector<8x5xf32>
    %cst_64 = arith.constant dense<0.000000e+00> : vector<8xf32>
    %161 = vector.multi_reduction <add>, %24, %cst_64 [1] : vector<8x32xf32> to vector<8xf32>
    %162 = vector.shape_cast %161 : vector<8xf32> to vector<8x1xf32>
    %cst_65 = arith.constant dense<0.000000e+00> : vector<8xf32>
    %163 = vector.multi_reduction <add>, %96, %cst_65 [1] : vector<8x48xf32> to vector<8xf32>
    %164 = vector.shape_cast %163 : vector<8xf32> to vector<8x1xf32>
    %165 = arith.addf %162, %164 : vector<8x1xf32>
    %166 = arith.mulf %24, %24 : vector<8x32xf32>
    %cst_66 = arith.constant dense<0.000000e+00> : vector<8xf32>
    %167 = vector.multi_reduction <add>, %166, %cst_66 [1] : vector<8x32xf32> to vector<8xf32>
    %168 = vector.shape_cast %167 : vector<8xf32> to vector<8x1xf32>
    %169 = arith.mulf %96, %96 : vector<8x48xf32>
    %cst_67 = arith.constant dense<0.000000e+00> : vector<8xf32>
    %170 = vector.multi_reduction <add>, %169, %cst_67 [1] : vector<8x48xf32> to vector<8xf32>
    %171 = vector.shape_cast %170 : vector<8xf32> to vector<8x1xf32>
    %172 = arith.addf %168, %171 : vector<8x1xf32>
    %cst_68 = arith.constant 8.000000e+01 : f32
    %173 = vector.broadcast %cst_68 : f32 to vector<8x1xf32>
    %174 = arith.divf %165, %173 : vector<8x1xf32>
    %cst_69 = arith.constant 8.000000e+01 : f32
    %175 = vector.broadcast %cst_69 : f32 to vector<8x1xf32>
    %176 = arith.divf %172, %175 : vector<8x1xf32>
    %177 = arith.mulf %174, %174 : vector<8x1xf32>
    %178 = arith.subf %176, %177 : vector<8x1xf32>
    %cst_70 = arith.constant 9.99999974E-6 : f32
    %179 = vector.broadcast %cst_70 : f32 to vector<8x1xf32>
    %180 = arith.addf %178, %179 : vector<8x1xf32>
    %181 = math.rsqrt %180 : vector<8x1xf32>
    %182 = vector.broadcast %174 : vector<8x1xf32> to vector<8x32xf32>
    %183 = arith.subf %24, %182 : vector<8x32xf32>
    %184 = vector.broadcast %181 : vector<8x1xf32> to vector<8x32xf32>
    %185 = arith.mulf %183, %184 : vector<8x32xf32>
    %c14 = arith.constant 14 : index
    %c0_71 = arith.constant 0 : index
    %186 = vector.load %arg2[%c14, %c0_71] : memref<25x128xf32, #tpu.memory_space<vmem>>, vector<1x32xf32>
    %187 = vector.broadcast %186 : vector<1x32xf32> to vector<8x32xf32>
    %188 = arith.mulf %185, %187 : vector<8x32xf32>
    %c16 = arith.constant 16 : index
    %c0_72 = arith.constant 0 : index
    %189 = vector.load %arg2[%c16, %c0_72] : memref<25x128xf32, #tpu.memory_space<vmem>>, vector<1x32xf32>
    %190 = vector.broadcast %189 : vector<1x32xf32> to vector<8x32xf32>
    %191 = arith.addf %188, %190 : vector<8x32xf32>
    %192 = vector.broadcast %174 : vector<8x1xf32> to vector<8x48xf32>
    %193 = arith.subf %96, %192 : vector<8x48xf32>
    %194 = vector.broadcast %181 : vector<8x1xf32> to vector<8x48xf32>
    %195 = arith.mulf %193, %194 : vector<8x48xf32>
    %c15 = arith.constant 15 : index
    %c0_73 = arith.constant 0 : index
    %196 = vector.load %arg2[%c15, %c0_73] : memref<25x128xf32, #tpu.memory_space<vmem>>, vector<1x48xf32>
    %197 = vector.broadcast %196 : vector<1x48xf32> to vector<8x48xf32>
    %198 = arith.mulf %195, %197 : vector<8x48xf32>
    %c17 = arith.constant 17 : index
    %c0_74 = arith.constant 0 : index
    %199 = vector.load %arg2[%c17, %c0_74] : memref<25x128xf32, #tpu.memory_space<vmem>>, vector<1x48xf32>
    %200 = vector.broadcast %199 : vector<1x48xf32> to vector<8x48xf32>
    %201 = arith.addf %198, %200 : vector<8x48xf32>
    %c6_75 = arith.constant 6 : index
    %c0_76 = arith.constant 0 : index
    %c0_77 = arith.constant 0 : index
    %202 = vector.load %arg3[%c6_75, %c0_76, %c0_77] : memref<10x64x128xf32, #tpu.memory_space<vmem>>, vector<1x32x40xf32>
    %203 = vector.shape_cast %202 : vector<1x32x40xf32> to vector<32x40xf32>
    %cst_78 = arith.constant dense<0.000000e+00> : vector<8x40xf32>
    %204 = tpu.matmul %191, %203, %cst_78 {dimension_numbers = #tpu.dot_dimension_numbers<[1], [0], [0], [1], [0, 0, 1, 1], [], []>} : vector<8x32xf32>, vector<32x40xf32>, vector<8x40xf32> -> vector<8x40xf32>
    %c7_79 = arith.constant 7 : index
    %c0_80 = arith.constant 0 : index
    %c0_81 = arith.constant 0 : index
    %205 = vector.load %arg3[%c7_79, %c0_80, %c0_81] : memref<10x64x128xf32, #tpu.memory_space<vmem>>, vector<1x48x40xf32>
    %206 = vector.shape_cast %205 : vector<1x48x40xf32> to vector<48x40xf32>
    %cst_82 = arith.constant dense<0.000000e+00> : vector<8x40xf32>
    %207 = tpu.matmul %201, %206, %cst_82 {dimension_numbers = #tpu.dot_dimension_numbers<[1], [0], [0], [1], [0, 0, 1, 1], [], []>} : vector<8x48xf32>, vector<48x40xf32>, vector<8x40xf32> -> vector<8x40xf32>
    %208 = arith.addf %204, %207 : vector<8x40xf32>
    %c18 = arith.constant 18 : index
    %c0_83 = arith.constant 0 : index
    %209 = vector.load %arg2[%c18, %c0_83] : memref<25x128xf32, #tpu.memory_space<vmem>>, vector<1x40xf32>
    %210 = vector.broadcast %209 : vector<1x40xf32> to vector<8x40xf32>
    %211 = arith.addf %208, %210 : vector<8x40xf32>
    %cst_84 = arith.constant dense<0.000000e+00> : vector<8xf32>
    %212 = vector.multi_reduction <add>, %211, %cst_84 [1] : vector<8x40xf32> to vector<8xf32>
    %213 = vector.shape_cast %212 : vector<8xf32> to vector<8x1xf32>
    %214 = arith.mulf %211, %211 : vector<8x40xf32>
    %cst_85 = arith.constant dense<0.000000e+00> : vector<8xf32>
    %215 = vector.multi_reduction <add>, %214, %cst_85 [1] : vector<8x40xf32> to vector<8xf32>
    %216 = vector.shape_cast %215 : vector<8xf32> to vector<8x1xf32>
    %cst_86 = arith.constant 4.000000e+01 : f32
    %217 = vector.broadcast %cst_86 : f32 to vector<8x1xf32>
    %218 = arith.divf %213, %217 : vector<8x1xf32>
    %cst_87 = arith.constant 4.000000e+01 : f32
    %219 = vector.broadcast %cst_87 : f32 to vector<8x1xf32>
    %220 = arith.divf %216, %219 : vector<8x1xf32>
    %221 = arith.mulf %218, %218 : vector<8x1xf32>
    %222 = arith.subf %220, %221 : vector<8x1xf32>
    %223 = vector.broadcast %218 : vector<8x1xf32> to vector<8x40xf32>
    %224 = arith.subf %211, %223 : vector<8x40xf32>
    %cst_88 = arith.constant 9.99999974E-6 : f32
    %225 = vector.broadcast %cst_88 : f32 to vector<8x1xf32>
    %226 = arith.addf %222, %225 : vector<8x1xf32>
    %227 = math.rsqrt %226 : vector<8x1xf32>
    %228 = vector.broadcast %227 : vector<8x1xf32> to vector<8x40xf32>
    %229 = arith.mulf %224, %228 : vector<8x40xf32>
    %c19 = arith.constant 19 : index
    %c0_89 = arith.constant 0 : index
    %230 = vector.load %arg2[%c19, %c0_89] : memref<25x128xf32, #tpu.memory_space<vmem>>, vector<1x40xf32>
    %231 = vector.broadcast %230 : vector<1x40xf32> to vector<8x40xf32>
    %232 = arith.mulf %229, %231 : vector<8x40xf32>
    %c20 = arith.constant 20 : index
    %c0_90 = arith.constant 0 : index
    %233 = vector.load %arg2[%c20, %c0_90] : memref<25x128xf32, #tpu.memory_space<vmem>>, vector<1x40xf32>
    %234 = vector.broadcast %233 : vector<1x40xf32> to vector<8x40xf32>
    %235 = arith.addf %232, %234 : vector<8x40xf32>
    %236 = arith.negf %235 : vector<8x40xf32>
    %237 = math.exp %236 : vector<8x40xf32>
    %cst_91 = arith.constant 1.000000e+00 : f32
    %238 = vector.broadcast %cst_91 : f32 to vector<8x40xf32>
    %239 = arith.addf %238, %237 : vector<8x40xf32>
    %240 = arith.divf %238, %239 : vector<8x40xf32>
    %241 = arith.mulf %235, %240 : vector<8x40xf32>
    %c8_92 = arith.constant 8 : index
    %c0_93 = arith.constant 0 : index
    %c0_94 = arith.constant 0 : index
    %242 = vector.load %arg3[%c8_92, %c0_93, %c0_94] : memref<10x64x128xf32, #tpu.memory_space<vmem>>, vector<1x40x24xf32>
    %243 = vector.shape_cast %242 : vector<1x40x24xf32> to vector<40x24xf32>
    %cst_95 = arith.constant dense<0.000000e+00> : vector<8x24xf32>
    %244 = tpu.matmul %241, %243, %cst_95 {dimension_numbers = #tpu.dot_dimension_numbers<[1], [0], [0], [1], [0, 0, 1, 1], [], []>} : vector<8x40xf32>, vector<40x24xf32>, vector<8x24xf32> -> vector<8x24xf32>
    %c21 = arith.constant 21 : index
    %c0_96 = arith.constant 0 : index
    %245 = vector.load %arg2[%c21, %c0_96] : memref<25x128xf32, #tpu.memory_space<vmem>>, vector<1x24xf32>
    %246 = vector.broadcast %245 : vector<1x24xf32> to vector<8x24xf32>
    %247 = arith.addf %244, %246 : vector<8x24xf32>
    %cst_97 = arith.constant dense<0.000000e+00> : vector<8xf32>
    %248 = vector.multi_reduction <add>, %247, %cst_97 [1] : vector<8x24xf32> to vector<8xf32>
    %249 = vector.shape_cast %248 : vector<8xf32> to vector<8x1xf32>
    %250 = arith.mulf %247, %247 : vector<8x24xf32>
    %cst_98 = arith.constant dense<0.000000e+00> : vector<8xf32>
    %251 = vector.multi_reduction <add>, %250, %cst_98 [1] : vector<8x24xf32> to vector<8xf32>
    %252 = vector.shape_cast %251 : vector<8xf32> to vector<8x1xf32>
    %cst_99 = arith.constant 2.400000e+01 : f32
    %253 = vector.broadcast %cst_99 : f32 to vector<8x1xf32>
    %254 = arith.divf %249, %253 : vector<8x1xf32>
    %cst_100 = arith.constant 2.400000e+01 : f32
    %255 = vector.broadcast %cst_100 : f32 to vector<8x1xf32>
    %256 = arith.divf %252, %255 : vector<8x1xf32>
    %257 = arith.mulf %254, %254 : vector<8x1xf32>
    %258 = arith.subf %256, %257 : vector<8x1xf32>
    %259 = vector.broadcast %254 : vector<8x1xf32> to vector<8x24xf32>
    %260 = arith.subf %247, %259 : vector<8x24xf32>
    %cst_101 = arith.constant 9.99999974E-6 : f32
    %261 = vector.broadcast %cst_101 : f32 to vector<8x1xf32>
    %262 = arith.addf %258, %261 : vector<8x1xf32>
    %263 = math.rsqrt %262 : vector<8x1xf32>
    %264 = vector.broadcast %263 : vector<8x1xf32> to vector<8x24xf32>
    %265 = arith.mulf %260, %264 : vector<8x24xf32>
    %c22 = arith.constant 22 : index
    %c0_102 = arith.constant 0 : index
    %266 = vector.load %arg2[%c22, %c0_102] : memref<25x128xf32, #tpu.memory_space<vmem>>, vector<1x24xf32>
    %267 = vector.broadcast %266 : vector<1x24xf32> to vector<8x24xf32>
    %268 = arith.mulf %265, %267 : vector<8x24xf32>
    %c23 = arith.constant 23 : index
    %c0_103 = arith.constant 0 : index
    %269 = vector.load %arg2[%c23, %c0_103] : memref<25x128xf32, #tpu.memory_space<vmem>>, vector<1x24xf32>
    %270 = vector.broadcast %269 : vector<1x24xf32> to vector<8x24xf32>
    %271 = arith.addf %268, %270 : vector<8x24xf32>
    %272 = arith.negf %271 : vector<8x24xf32>
    %273 = math.exp %272 : vector<8x24xf32>
    %cst_104 = arith.constant 1.000000e+00 : f32
    %274 = vector.broadcast %cst_104 : f32 to vector<8x24xf32>
    %275 = arith.addf %274, %273 : vector<8x24xf32>
    %276 = arith.divf %274, %275 : vector<8x24xf32>
    %277 = arith.mulf %271, %276 : vector<8x24xf32>
    %c9_105 = arith.constant 9 : index
    %c0_106 = arith.constant 0 : index
    %c0_107 = arith.constant 0 : index
    %278 = vector.load %arg3[%c9_105, %c0_106, %c0_107] : memref<10x64x128xf32, #tpu.memory_space<vmem>>, vector<1x24x5xf32>
    %279 = vector.shape_cast %278 : vector<1x24x5xf32> to vector<24x5xf32>
    %cst_108 = arith.constant dense<0.000000e+00> : vector<8x5xf32>
    %280 = tpu.matmul %277, %279, %cst_108 {dimension_numbers = #tpu.dot_dimension_numbers<[1], [0], [0], [1], [0, 0, 1, 1], [], []>} : vector<8x24xf32>, vector<24x5xf32>, vector<8x5xf32> -> vector<8x5xf32>
    %c24 = arith.constant 24 : index
    %c0_109 = arith.constant 0 : index
    %281 = vector.load %arg2[%c24, %c0_109] : memref<25x128xf32, #tpu.memory_space<vmem>>, vector<1x5xf32>
    %282 = vector.broadcast %281 : vector<1x5xf32> to vector<8x5xf32>
    %283 = arith.addf %280, %282 : vector<8x5xf32>
    %284 = arith.negf %283 : vector<8x5xf32>
    %285 = math.exp %284 : vector<8x5xf32>
    %cst_110 = arith.constant 1.000000e+00 : f32
    %286 = vector.broadcast %cst_110 : f32 to vector<8x5xf32>
    %287 = arith.addf %286, %285 : vector<8x5xf32>
    %288 = arith.divf %286, %287 : vector<8x5xf32>
    %cst_111 = arith.constant 0.000000e+00 : f32
    %289 = vector.broadcast %cst_111 : f32 to vector<8x81xf32>
    %290 = tpu.concatenate %107, %113, %160, %288, %289 in 1 : vector<8x5xf32>, vector<8x32xf32>, vector<8x5xf32>, vector<8x5xf32>, vector<8x81xf32> -> vector<8x128xf32>
    %c0_112 = arith.constant 0 : index
    %c0_113 = arith.constant 0 : index
    %291 = vector.load %arg4[%c0_112, %c0_113] : memref<8x128xf32, #tpu.memory_space<vmem>>, vector<8x128xf32>
    tpu.vector_store %arg4[%c0_112, %c0_113], %290 {strides = array<i32>} : memref<8x128xf32, #tpu.memory_space<vmem>>, vector<8x128xf32>,
    return
  }
  func.func @transform_0(%arg0: i32) -> (i32, i32) {
    %c0_i32 = arith.constant 0 : i32
    %c0_i32_0 = arith.constant 0 : i32
    return %arg0, %c0_i32 : i32, i32
  }
  func.func @transform_1(%arg0: i32) -> (i32, i32) {
    %c0_i32 = arith.constant 0 : i32
    %c0_i32_0 = arith.constant 0 : i32
    %c0_i32_1 = arith.constant 0 : i32
    return %c0_i32, %c0_i32_0 : i32, i32
  }
  func.func @transform_2(%arg0: i32) -> (i32, i32, i32) {
    %c0_i32 = arith.constant 0 : i32
    %c0_i32_0 = arith.constant 0 : i32
    %c0_i32_1 = arith.constant 0 : i32
    %c0_i32_2 = arith.constant 0 : i32
    return %c0_i32, %c0_i32_0, %c0_i32_1 : i32, i32, i32
  }
  func.func @transform_3(%arg0: i32) -> (i32, i32) {
    %c0_i32 = arith.constant 0 : i32
    %c0_i32_0 = arith.constant 0 : i32
    return %arg0, %c0_i32 : i32, i32
  }
}

</mosaic_0001>

<llo_original>
// kernel: forward.1
$region0: #{forward.1}
  #allocation0 [shape = 'u32[]', space=smem, size = 0x4, offset = 0x4, fixed_abs, tag = 'smem constant byte address 0x4 - core index']
  #allocation1 [shape = 'u32[144,128]{1,0:T(1,128)}', space=vmem, size = 0x12000, scoped, tag = 'internal scratch']
  %s0 = inlined_call_operand.hbm [shape: f32[16,32], index: 0, kind: input, shape index: {}]
  %s1 = inlined_call_operand.hbm [shape: f32[25,128], index: 1, kind: input, shape index: {}]
  %s2 = inlined_call_operand.hbm [shape: f32[10,64,128], index: 2, kind: input, shape index: {}]
  %s3 = inlined_call_operand.vmem [shape: f32[16,128], index: 3, kind: output, shape index: {}]
  %s4 = sld [smem:[#allocation0]]
  $region57: #{forward.1} parent=0
    _
  %s6 = ssub.s32 1, %s4
  %s7 = scalar_select 0, %s6, %s4
  $region1: #{forward.1} parent=0
    #allocation2 [shape = 'u8[8192]{0}', space=vmem, size = 0x2000, scoped, tag = 'input window, operand 0']
    #allocation3 [shape = 's32[2]{0}', space=sflag, size = 0x8, scoped, tag = 'scoped memory for forward.1']
    #allocation4 [shape = 'u8[16384]{0}', space=vmem, size = 0x4000, scoped, tag = 'input window, operand 1, single buffered']
    #allocation5 [shape = 's32[1]{0}', space=sflag, size = 0x4, scoped, tag = 'scoped memory for forward.1']
    #allocation6 [shape = 'u8[327680]{0}', space=vmem, size = 0x50000, scoped, tag = 'input window, operand 2, single buffered']
    %8 = vsyncpa [#allocation3], 0
    %s9 = scalar_lea.sflag [#allocation3], 1
    %10 = vsyncpa %s9, 0
    %11 = vsyncpa [#allocation5], 0
    loop: start=0, step=1, limit=4
    $region2: #{forward.1} parent=1 // loop_pre_header
      _
    $region3: #{forward.1} parent=1 // loop_header
      %s13 = sphi 0, %s17
      %p14 = scmp.ge.s32.totalorder %s13, 4
      %s23 = sphi 0, %s25
      %s26 = sphi 0, %s23
      %s27 = sphi 0, %s26
      %s43 = sphi 0, %s27
      %s47 = sphi 0, %s47
      %s49 = sphi 0, %s47
      %s50 = sphi 0, %s49
      %s64 = sphi 0, %s50
      %s68 = sphi 0, %s68
      %s70 = sphi 0, %s68
      %s71 = sphi 0, %s70
      %s85 = sphi 0, %s71
      %s91 = sphi 0, %s93
      %s94 = sphi 0, %s91
      %s95 = sphi 0, %s94
      %s111 = sphi 0, %s95
    $region4: #{forward.1} parent=1 // loop_header_branch
      %16 = sbr.rel (%p14) target = $region8
    $region5: #{forward.1} parent=1 // loop_body
      %s18 = ssub.s32 %s13, 1
      %s19 = ssub.s32 %s13, 2
      %s20 = sadd.s32 %s13, 1
      %s21 = ssub.s32 %s13, %s20
      %p22 = scmp.eq.s32.totalorder %s21, 0
      %s24 = sadd.s32 %s23, 1
      %s25 = scalar_select %p22, %s23, %s24
      %p28 = pneg %p22
      %p29 = scmp.eq.s32.totalorder %s13, 1
      %p30 = por %p28, %p29
      %p31 = scmp.ne.s32.totalorder %s23, %s26
      %p32 = scmp.eq.s32.totalorder %s13, 0
      %p33 = por %p31, %p32
      %p34 = scmp.ne.s32.totalorder %s23, %s26
      %p35 = scmp.eq.s32.totalorder %s18, 1
      %p36 = por %p34, %p35
      %p37 = scmp.ne.s32.totalorder %s26, %s27
      %p38 = scmp.eq.s32.totalorder %s18, 0
      %p39 = por %p37, %p38
      %p40 = scmp.ne.s32.totalorder %s26, %s27
      %p41 = scmp.eq.s32.totalorder %s19, 1
      %p42 = por %p40, %p41
      %p44 = scmp.ne.s32.totalorder %s27, %s43
      %p45 = scmp.eq.s32.totalorder %s19, 0
      %p46 = por %p44, %p45
      %s48 = sadd.s32 %s47, 1
      %p51 = scmp.eq.s32.totalorder %s13, 1
      %p52 = scmp.ne.s32.totalorder %s47, %s49
      %p53 = scmp.eq.s32.totalorder %s13, 0
      %p54 = por %p52, %p53
      %p55 = scmp.ne.s32.totalorder %s47, %s49
      %p56 = scmp.eq.s32.totalorder %s18, 1
      %p57 = por %p55, %p56
      %p58 = scmp.ne.s32.totalorder %s49, %s50
      %p59 = scmp.eq.s32.totalorder %s18, 0
      %p60 = por %p58, %p59
      %p61 = scmp.ne.s32.totalorder %s49, %s50
      %p62 = scmp.eq.s32.totalorder %s19, 1
      %p63 = por %p61, %p62
      %p65 = scmp.ne.s32.totalorder %s50, %s64
      %p66 = scmp.eq.s32.totalorder %s19, 0
      %p67 = por %p65, %p66
      %s69 = sadd.s32 %s68, 1
      %p72 = scmp.eq.s32.totalorder %s13, 1
      %p73 = scmp.ne.s32.totalorder %s68, %s70
      %p74 = scmp.eq.s32.totalorder %s13, 0
      %p75 = por %p73, %p74
      %p76 = scmp.ne.s32.totalorder %s68, %s70
      %p77 = scmp.eq.s32.totalorder %s18, 1
      %p78 = por %p76, %p77
      %p79 = scmp.ne.s32.totalorder %s70, %s71
      %p80 = scmp.eq.s32.totalorder %s18, 0
      %p81 = por %p79, %p80
      %p82 = scmp.ne.s32.totalorder %s70, %s71
      %p83 = scmp.eq.s32.totalorder %s19, 1
      %p84 = por %p82, %p83
      %p86 = scmp.ne.s32.totalorder %s71, %s85
      %p87 = scmp.eq.s32.totalorder %s19, 0
      %p88 = por %p86, %p87
      %s89 = ssub.s32 %s13, %s20
      %p90 = scmp.eq.s32.totalorder %s89, 0
      %s92 = sadd.s32 %s91, 1
      %s93 = scalar_select %p90, %s91, %s92
      %p96 = pneg %p90
      %p97 = scmp.eq.s32.totalorder %s13, 1
      %p98 = por %p96, %p97
      %p99 = scmp.ne.s32.totalorder %s91, %s94
      %p100 = scmp.eq.s32.totalorder %s13, 0
      %p101 = por %p99, %p100
      %p102 = scmp.ne.s32.totalorder %s91, %s94
      %p103 = scmp.eq.s32.totalorder %s18, 1
      %p104 = por %p102, %p103
      %p105 = scmp.ne.s32.totalorder %s94, %s95
      %p106 = scmp.eq.s32.totalorder %s18, 0
      %p107 = por %p105, %p106
      %p108 = scmp.ne.s32.totalorder %s94, %s95
      %p109 = scmp.eq.s32.totalorder %s19, 1
      %p110 = por %p108, %p109
      %p112 = scmp.ne.s32.totalorder %s95, %s111
      %p113 = scmp.eq.s32.totalorder %s19, 0
      %p114 = por %p112, %p113
      %p115 = scmp.le.s32.totalorder 1, %s13
      %p116 = scmp.lt.s32.totalorder %s13, 3
      %p117 = pnand %p115, %p116
      %p118 = pneg %p117
      // Predicated region
      $region9: #{forward.1} parent=5 // pred_check
        _
      $region10: #{forward.1} parent=5 // pred_check_branch
        %120 = sbr.rel (%p117) target = $region12
      $region11: #{forward.1} parent=5 // pred_region
        %s121 = ssub.s32 %s13, 1
        // Predicated region
        $region13: #{forward.1} parent=11 // pred_check
          %p122 = pneg %p60
        $region14: #{forward.1} parent=11 // pred_check_branch
          %124 = sbr.rel (%p122) target = $region16
        $region15: #{forward.1} parent=11 // pred_region
          %s126 = ssub.s32 512, 512
          %127 = vsyncadd [#allocation5], %s126
          %s128 = sshll.u32 [#allocation4], 4
          %s129 = int_to_ptr.vmem [resolvable:$true] %s128
          %134 = dma.hbm_to_vmem [thread:$0]  %s1, 512, %s129, [#allocation5], 128, 128, 8
        $region16: #{forward.1} parent=11 // pred_fallthru
          _
        // Predicated region
        $region17: #{forward.1} parent=11 // pred_check
          %p135 = pneg %p81
        $region18: #{forward.1} parent=11 // pred_check_branch
          %137 = sbr.rel (%p135) target = $region20
        $region19: #{forward.1} parent=11 // pred_region
          %s139 = ssub.s32 10240, 10240
          %140 = vsyncadd [#allocation5], %s139
          %s141 = sshll.u32 [#allocation6], 4
          %s142 = int_to_ptr.vmem [resolvable:$true] %s141
          %147 = dma.hbm_to_vmem [thread:$0]  %s2, 10240, %s142, [#allocation5], 128, 128, 8
        $region20: #{forward.1} parent=11 // pred_fallthru
          _
      $region12: #{forward.1} parent=5 // pred_fallthru
        _
      %p148 = scmp.lt.s32.totalorder %s13, 2
      // Predicated region
      $region21: #{forward.1} parent=5 // pred_check
        %p149 = pneg %p148
      $region22: #{forward.1} parent=5 // pred_check_branch
        %151 = sbr.rel (%p149) target = $region24
      $region23: #{forward.1} parent=5 // pred_region
        // Predicated region
        $region25: #{forward.1} parent=23 // pred_check
          %p152 = pneg %p33
        $region26: #{forward.1} parent=23 // pred_check_branch
          %154 = sbr.rel (%p152) target = $region28
        $region27: #{forward.1} parent=23 // pred_region
          %s155 = sand.u32 %s23, 1
          %s156 = scalar_lea.sflag [#allocation3], %s155
          %s157 = sand.u32 %s23, 1
          %s158 = smul.addr %s157, 8
          %s159 = scalar_lea.vmem [#allocation2], %s158
          %s161 = ssub.s32 128, 128
          %162 = vsyncadd %s156, %s161
          %s163 = smul.addr %s13, 128
          %s164 = scalar_lea.hbm %s0, %s163
          %s166 = sshll.u32 %s159, 4
          %s167 = int_to_ptr.vmem [resolvable:$true] %s166
          %169 = dma.hbm_to_vmem [thread:$0]  %s164, 128, %s167, %s156
        $region28: #{forward.1} parent=23 // pred_fallthru
          _
      $region24: #{forward.1} parent=5 // pred_fallthru
        _
      %p170 = scmp.le.s32.totalorder 1, %s13
      %p171 = scmp.lt.s32.totalorder %s13, 3
      %p172 = pnand %p170, %p171
      %p173 = pneg %p172
      // Predicated region
      $region29: #{forward.1} parent=5 // pred_check
        _
      $region30: #{forward.1} parent=5 // pred_check_branch
        %175 = sbr.rel (%p172) target = $region32
      $region31: #{forward.1} parent=5 // pred_region
        %s176 = ssub.s32 %s13, 1
        %s177 = sand.u32 %s26, 1
        %s178 = scalar_lea.sflag [#allocation3], %s177
        %s179 = sand.u32 %s26, 1
        %s180 = smul.addr %s179, 8
        %s181 = scalar_lea.vmem [#allocation2], %s180
        // Predicated region
        $region33: #{forward.1} parent=31 // pred_check
          %p182 = pneg %p39
        $region34: #{forward.1} parent=31 // pred_check_branch
          %184 = sbr.rel (%p182) target = $region36
        $region35: #{forward.1} parent=31 // pred_region
          %185 = dma.done %s178, 128
        $region36: #{forward.1} parent=31 // pred_fallthru
          _
        // Predicated region
        $region37: #{forward.1} parent=31 // pred_check
          %p186 = pneg %p60
        $region38: #{forward.1} parent=31 // pred_check_branch
          %188 = sbr.rel (%p186) target = $region40
        $region39: #{forward.1} parent=31 // pred_region
          %189 = dma.done [#allocation5], 512
        $region40: #{forward.1} parent=31 // pred_fallthru
          _
        // Predicated region
        $region41: #{forward.1} parent=31 // pred_check
          %p190 = pneg %p81
        $region42: #{forward.1} parent=31 // pred_check_branch
          %192 = sbr.rel (%p190) target = $region44
        $region43: #{forward.1} parent=31 // pred_region
          %193 = dma.done [#allocation5], 10240
        $region44: #{forward.1} parent=31 // pred_fallthru
          _
        %s194 = sand.u32 %s26, 1
        %s195 = scalar_lea.sflag [#allocation3], %s194
        %s196 = sand.u32 %s26, 1
        %s197 = smul.addr %s196, 8
        %s198 = scalar_lea.vmem [#allocation2], %s197
        %p199 = pneg %p39
        %p200 = pneg %p36
        %p201 = pneg %p60
        %p202 = pneg %p57
        %p203 = pneg %p81
        %p204 = pneg %p78
        %p205 = pneg %p107
        %p206 = pneg %p104
        %p207 = scmp.lt.s32.totalorder %s18, 1
        %s208 = scalar_select %p207, %s18, 1
        %s209 = smul.addr %s208, 8
        %s210 = scalar_lea.vmem %s3, %s209
        %p211 = scmp.lt.s32.totalorder %s18, 1
        %s212 = scalar_select %p211, %s18, 1
        %s213 = smul.addr %s212, 8
        %s214 = scalar_lea.vmem %s3, %s213
        %v215 = vld [vmem:[%s181] sm:$0xff]
        %vm216 = vcmask 261120
        %v217 = vsel %vm216, %v215, 0.0
        %218 = vadd.xlane.f32.xlu0 %v217
        %v219 = vpop.xlane.xlu0 %218
        %v220 = vmul.f32 %v215, %v215
        %v221 = vsel %vm216, %v220, 0.0
        %222 = vadd.xlane.f32.xlu0 %v221
        %v223 = vpop.xlane.xlu0 %222
        %v224 = vrcp.pop 32.0
        %v225 = vmul.f32 %v219, %v224
        %v226 = vmul.f32 %v223, %v224
        %v227 = vmul.f32 %v225, %v225
        %v228 = vsub.f32 %v226, %v227
        %v229 = vsub.f32 %v215, %v225
        %v230 = vadd.f32 %v228, 1e-05
        %v231 = vrsqrt.pop %v230
        %v232 = vmul.f32 %v229, %v231
        %v233 = vld [vmem:[#allocation4] sm:$0x1]
        %v234 = vlaneseq
        %v235 = vshrl.u32 %v234, 7
        %v236 = vsub.s32 0, %v235
        %v237 = vrot.slane %v233, %v236
        %v238 = vmul.f32 %v232, %v237
        %v239 = vld [vmem:[#allocation4 + $0x1] sm:$0x1]
        %v240 = vlaneseq
        %v241 = vshrl.u32 %v240, 7
        %v242 = vsub.s32 0, %v241
        %v243 = vrot.slane %v239, %v242
        %v244 = vadd.f32 %v238, %v243
        %v245 = vld [vmem:[#allocation6] sm:$0xff]
        %v246 = vld [vmem:[#allocation6 + $0x8] sm:$0xff]
        %v247 = vld [vmem:[#allocation6 + $0x10] sm:$0xff]
        %v248 = vld [vmem:[#allocation6 + $0x18] sm:$0xff]
        %v249 = vld [vmem:[#allocation4 + $0x2] sm:$0x1]
        %v250 = vlaneseq
        %v251 = vshrl.u32 %v250, 7
        %v252 = vsub.s32 0, %v251
        %v253 = vrot.slane %v249, %v252
        %v255 = vsel %vm216, %v244, 0
        %257 = vmatprep.subr.mxu0 0.0
        %258 = vmatpush1.msra.mxu0 %v245
        %259 = vmatprep.subr.mxu0 0.0
        %260 = vmatpush1.msra.mxu0 %v246
        %261 = vmatprep.subr.mxu0 0.0
        %262 = vmatpush1.msra.mxu0 %v247
        %263 = vmatprep.subr.mxu0 0.0
        %264 = vmatpush1.msra.mxu0 %v248
        %265 = vmatprep.subr.mxu0 0.0
        %266 = vmatpush1.msra.mxu0 0.0
        %267 = vmatprep.subr.mxu0 0.0
        %268 = vmatpush1.msra.mxu0 0.0
        %269 = vmatprep.subr.mxu0 0.0
        %270 = vmatpush1.msra.mxu0 0.0
        %271 = vmatprep.subr.mxu0 0.0
        %272 = vmatpush1.msra.mxu0 0.0
        %273 = vmatprep.subr.mxu0 0.0
        %274 = vmatpush1.msra.mxu0 0.0
        %275 = vmatprep.subr.mxu0 0.0
        %276 = vmatpush1.msra.mxu0 0.0
        %277 = vmatprep.subr.mxu0 0.0
        %278 = vmatpush1.msra.mxu0 0.0
        %279 = vmatprep.subr.mxu0 0.0
        %280 = vmatpush1.msra.mxu0 0.0
        %281 = vmatprep.subr.mxu0 0.0
        %282 = vmatpush1.msra.mxu0 0.0
        %283 = vmatprep.subr.mxu0 0.0
        %284 = vmatpush1.msra.mxu0 0.0
        %285 = vmatprep.subr.mxu0 0.0
        %286 = vmatpush1.msra.mxu0 0.0
        %287 = vmatprep.subr.mxu0 0.0
        %288 = vmatpush1.msra.mxu0 0.0
        %289 = vmatprep.subr.mxu0 0.0
        %290 = vmatpush1.msra.mxu0 0.0
        %291 = vmatprep.subr.mxu0 0.0
        %292 = vmatpush1.msra.mxu0 0.0
        %293 = vmatprep.subr.mxu0 0.0
        %294 = vmatpush1.msra.mxu0 0.0
        %295 = vmatprep.subr.mxu0 0.0
        %296 = vmatpush1.msra.mxu0 0.0
        %297 = vmatprep.subr.mxu0 0.0
        %298 = vmatpush1.msra.mxu0 0.0
        %299 = vmatprep.subr.mxu0 0.0
        %300 = vmatpush1.msra.mxu0 0.0
        %301 = vmatprep.subr.mxu0 0.0
        %302 = vmatpush1.msra.mxu0 0.0
        %303 = vmatprep.subr.mxu0 0.0
        %304 = vmatpush1.msra.mxu0 0.0
        %305 = vmatprep.subr.mxu0 0.0
        %306 = vmatpush1.msra.mxu0 0.0
        %307 = vmatprep.subr.mxu0 0.0
        %308 = vmatpush1.msra.mxu0 0.0
        %309 = vmatprep.subr.mxu0 0.0
        %310 = vmatpush1.msra.mxu0 0.0
        %311 = vmatprep.subr.mxu0 0.0
        %312 = vmatpush1.msra.mxu0 0.0
        %313 = vmatprep.subr.mxu0 0.0
        %314 = vmatpush1.msra.mxu0 0.0
        %315 = vmatprep.subr.mxu0 0.0
        %316 = vmatpush1.msra.mxu0 0.0
        %317 = vmatprep.subr.mxu0 0.0
        %318 = vmatpush1.msra.mxu0 0.0
        %319 = vmatprep.subr.mxu0 0.0
        %320 = vmatpush1.msra.mxu0 0.0
        %321 = vmatprep.mubr.f32.mxu0 0.0
        %322 = vmatmul.mubr.f32.gmra.mrb[0].mxu0 %v255
        %v323 = vpop.f32.mrb[0].mxu0
        %v324 = vadd.f32 %v253, %v323
        %v325 = vpop.f32.mrb[0].mxu0
        %326 = vdwg.mxu0
        %vm327 = vcmask 523264
        %v328 = vsel %vm327, %v324, 0.0
        %329 = vadd.xlane.f32.xlu0 %v328
        %v330 = vpop.xlane.xlu0 %329
        %v331 = vmul.f32 %v324, %v324
        %v332 = vsel %vm327, %v331, 0.0
        %333 = vadd.xlane.f32.xlu0 %v332
        %v334 = vpop.xlane.xlu0 %333
        %v335 = vrcp.pop 64.0
        %v336 = vmul.f32 %v330, %v335
        %v337 = vmul.f32 %v334, %v335
        %v338 = vmul.f32 %v336, %v336
        %v339 = vsub.f32 %v337, %v338
        %v340 = vsub.f32 %v324, %v336
        %v341 = vadd.f32 %v339, 1e-05
        %v342 = vrsqrt.pop %v341
        %v343 = vmul.f32 %v340, %v342
        %v344 = vld [vmem:[#allocation4 + $0x3] sm:$0x1]
        %v345 = vlaneseq
        %v346 = vshrl.u32 %v345, 7
        %v347 = vsub.s32 0, %v346
        %v348 = vrot.slane %v344, %v347
        %v349 = vmul.f32 %v343, %v348
        %v350 = vld [vmem:[#allocation4 + $0x4] sm:$0x1]
        %v351 = vlaneseq
        %v352 = vshrl.u32 %v351, 7
        %v353 = vsub.s32 0, %v352
        %v354 = vrot.slane %v350, %v353
        %v355 = vadd.f32 %v349, %v354
        %v356 = vxor.u32 %v355, 2147483648
        %v357 = vmul.f32 %v356, 1.442695
        %v358 = vpow.pop %v357
        %v359 = vadd.f32 %v358, 1.0
        %v360 = vrcp.pop %v359
        %v361 = vmul.f32 1.0, %v360
        %v362 = vmul.f32 %v355, %v361
        %s363 = scalar_lea.vmem [#allocation6], 64
        %v364 = vld [vmem:[%s363] sm:$0xff]
        %v365 = vld [vmem:[%s363 + $0x8] sm:$0xff]
        %v366 = vld [vmem:[%s363 + $0x10] sm:$0xff]
        %v367 = vld [vmem:[%s363 + $0x18] sm:$0xff]
        %v368 = vld [vmem:[%s363 + $0x20] sm:$0xff]
        %v369 = vld [vmem:[%s363 + $0x28] sm:$0xff]
        %v370 = vld [vmem:[%s363 + $0x30] sm:$0xff]
        %v371 = vld [vmem:[%s363 + $0x38] sm:$0xff]
        %v372 = vld [vmem:[#allocation4 + $0x5] sm:$0x1]
        %v373 = vlaneseq
        %v374 = vshrl.u32 %v373, 7
        %v375 = vsub.s32 0, %v374
        %v376 = vrot.slane %v372, %v375
        %v378 = vsel %vm327, %v362, 0
        %380 = vmatprep.subr.mxu0 0.0
        %381 = vmatpush1.msra.mxu0 %v364
        %382 = vmatprep.subr.mxu0 0.0
        %383 = vmatpush1.msra.mxu0 %v365
        %384 = vmatprep.subr.mxu0 0.0
        %385 = vmatpush1.msra.mxu0 %v366
        %386 = vmatprep.subr.mxu0 0.0
        %387 = vmatpush1.msra.mxu0 %v367
        %388 = vmatprep.subr.mxu0 0.0
        %389 = vmatpush1.msra.mxu0 %v368
        %390 = vmatprep.subr.mxu0 0.0
        %391 = vmatpush1.msra.mxu0 %v369
        %392 = vmatprep.subr.mxu0 0.0
        %393 = vmatpush1.msra.mxu0 %v370
        %394 = vmatprep.subr.mxu0 0.0
        %395 = vmatpush1.msra.mxu0 %v371
        %396 = vmatprep.subr.mxu0 0.0
        %397 = vmatpush1.msra.mxu0 0.0
        %398 = vmatprep.subr.mxu0 0.0
        %399 = vmatpush1.msra.mxu0 0.0
        %400 = vmatprep.subr.mxu0 0.0
        %401 = vmatpush1.msra.mxu0 0.0
        %402 = vmatprep.subr.mxu0 0.0
        %403 = vmatpush1.msra.mxu0 0.0
        %404 = vmatprep.subr.mxu0 0.0
        %405 = vmatpush1.msra.mxu0 0.0
        %406 = vmatprep.subr.mxu0 0.0
        %407 = vmatpush1.msra.mxu0 0.0
        %408 = vmatprep.subr.mxu0 0.0
        %409 = vmatpush1.msra.mxu0 0.0
        %410 = vmatprep.subr.mxu0 0.0
        %411 = vmatpush1.msra.mxu0 0.0
        %412 = vmatprep.subr.mxu0 0.0
        %413 = vmatpush1.msra.mxu0 0.0
        %414 = vmatprep.subr.mxu0 0.0
        %415 = vmatpush1.msra.mxu0 0.0
        %416 = vmatprep.subr.mxu0 0.0
        %417 = vmatpush1.msra.mxu0 0.0
        %418 = vmatprep.subr.mxu0 0.0
        %419 = vmatpush1.msra.mxu0 0.0
        %420 = vmatprep.subr.mxu0 0.0
        %421 = vmatpush1.msra.mxu0 0.0
        %422 = vmatprep.subr.mxu0 0.0
        %423 = vmatpush1.msra.mxu0 0.0
        %424 = vmatprep.subr.mxu0 0.0
        %425 = vmatpush1.msra.mxu0 0.0
        %426 = vmatprep.subr.mxu0 0.0
        %427 = vmatpush1.msra.mxu0 0.0
        %428 = vmatprep.subr.mxu0 0.0
        %429 = vmatpush1.msra.mxu0 0.0
        %430 = vmatprep.subr.mxu0 0.0
        %431 = vmatpush1.msra.mxu0 0.0
        %432 = vmatprep.subr.mxu0 0.0
        %433 = vmatpush1.msra.mxu0 0.0
        %434 = vmatprep.subr.mxu0 0.0
        %435 = vmatpush1.msra.mxu0 0.0
        %436 = vmatprep.subr.mxu0 0.0
        %437 = vmatpush1.msra.mxu0 0.0
        %438 = vmatprep.subr.mxu0 0.0
        %439 = vmatpush1.msra.mxu0 0.0
        %440 = vmatprep.subr.mxu0 0.0
        %441 = vmatpush1.msra.mxu0 0.0
        %442 = vmatprep.subr.mxu0 0.0
        %443 = vmatpush1.msra.mxu0 0.0
        %444 = vmatprep.mubr.f32.mxu0 0.0
        %445 = vmatmul.mubr.f32.gmra.mrb[0].mxu0 %v378
        %v446 = vpop.f32.mrb[0].mxu0
        %v447 = vadd.f32 %v376, %v446
        %v448 = vpop.f32.mrb[0].mxu0
        %449 = vdwg.mxu0
        %vm450 = vcmask 392192
        %v451 = vsel %vm450, %v447, 0.0
        %452 = vadd.xlane.f32.xlu0 %v451
        %v453 = vpop.xlane.xlu0 %452
        %v454 = vmul.f32 %v447, %v447
        %v455 = vsel %vm450, %v454, 0.0
        %456 = vadd.xlane.f32.xlu0 %v455
        %v457 = vpop.xlane.xlu0 %456
        %v458 = vrcp.pop 48.0
        %v459 = vmul.f32 %v453, %v458
        %v460 = vmul.f32 %v457, %v458
        %v461 = vmul.f32 %v459, %v459
        %v462 = vsub.f32 %v460, %v461
        %v463 = vsub.f32 %v447, %v459
        %v464 = vadd.f32 %v462, 1e-05
        %v465 = vrsqrt.pop %v464
        %v466 = vmul.f32 %v463, %v465
        %v467 = vld [vmem:[#allocation4 + $0x6] sm:$0x1]
        %v468 = vlaneseq
        %v469 = vshrl.u32 %v468, 7
        %v470 = vsub.s32 0, %v469
        %v471 = vrot.slane %v467, %v470
        %v472 = vmul.f32 %v466, %v471
        %v473 = vld [vmem:[#allocation4 + $0x7] sm:$0x1]
        %v474 = vlaneseq
        %v475 = vshrl.u32 %v474, 7
        %v476 = vsub.s32 0, %v475
        %v477 = vrot.slane %v473, %v476
        %v478 = vadd.f32 %v472, %v477
        %v479 = vxor.u32 %v478, 2147483648
        %v480 = vmul.f32 %v479, 1.442695
        %v481 = vpow.pop %v480
        %v482 = vadd.f32 %v481, 1.0
        %v483 = vrcp.pop %v482
        %v484 = vmul.f32 1.0, %v483
        %v485 = vmul.f32 %v478, %v484
        %s486 = scalar_lea.vmem [#allocation6], 128
        %v487 = vld [vmem:[%s486] sm:$0xff]
        %v488 = vld [vmem:[%s486 + $0x8] sm:$0xff]
        %v489 = vld [vmem:[%s486 + $0x10] sm:$0xff]
        %v490 = vld [vmem:[%s486 + $0x18] sm:$0xff]
        %v491 = vld [vmem:[%s486 + $0x20] sm:$0xff]
        %v492 = vld [vmem:[%s486 + $0x28] sm:$0xff]
        %v493 = vld [vmem:[#allocation4 + $0x8] sm:$0x1]
        %v494 = vlaneseq
        %v495 = vshrl.u32 %v494, 7
        %v496 = vsub.s32 0, %v495
        %v497 = vrot.slane %v493, %v496
        %v499 = vsel %vm450, %v485, 0
        %501 = vmatprep.subr.mxu0 0.0
        %502 = vmatpush1.msra.mxu0 %v487
        %503 = vmatprep.subr.mxu0 0.0
        %504 = vmatpush1.msra.mxu0 %v488
        %505 = vmatprep.subr.mxu0 0.0
        %506 = vmatpush1.msra.mxu0 %v489
        %507 = vmatprep.subr.mxu0 0.0
        %508 = vmatpush1.msra.mxu0 %v490
        %509 = vmatprep.subr.mxu0 0.0
        %510 = vmatpush1.msra.mxu0 %v491
        %511 = vmatprep.subr.mxu0 0.0
        %512 = vmatpush1.msra.mxu0 %v492
        %513 = vmatprep.subr.mxu0 0.0
        %514 = vmatpush1.msra.mxu0 0.0
        %515 = vmatprep.subr.mxu0 0.0
        %516 = vmatpush1.msra.mxu0 0.0
        %517 = vmatprep.subr.mxu0 0.0
        %518 = vmatpush1.msra.mxu0 0.0
        %519 = vmatprep.subr.mxu0 0.0
        %520 = vmatpush1.msra.mxu0 0.0
        %521 = vmatprep.subr.mxu0 0.0
        %522 = vmatpush1.msra.mxu0 0.0
        %523 = vmatprep.subr.mxu0 0.0
        %524 = vmatpush1.msra.mxu0 0.0
        %525 = vmatprep.subr.mxu0 0.0
        %526 = vmatpush1.msra.mxu0 0.0
        %527 = vmatprep.subr.mxu0 0.0
        %528 = vmatpush1.msra.mxu0 0.0
        %529 = vmatprep.subr.mxu0 0.0
        %530 = vmatpush1.msra.mxu0 0.0
        %531 = vmatprep.subr.mxu0 0.0
        %532 = vmatpush1.msra.mxu0 0.0
        %533 = vmatprep.subr.mxu0 0.0
        %534 = vmatpush1.msra.mxu0 0.0
        %535 = vmatprep.subr.mxu0 0.0
        %536 = vmatpush1.msra.mxu0 0.0
        %537 = vmatprep.subr.mxu0 0.0
        %538 = vmatpush1.msra.mxu0 0.0
        %539 = vmatprep.subr.mxu0 0.0
        %540 = vmatpush1.msra.mxu0 0.0
        %541 = vmatprep.subr.mxu0 0.0
        %542 = vmatpush1.msra.mxu0 0.0
        %543 = vmatprep.subr.mxu0 0.0
        %544 = vmatpush1.msra.mxu0 0.0
        %545 = vmatprep.subr.mxu0 0.0
        %546 = vmatpush1.msra.mxu0 0.0
        %547 = vmatprep.subr.mxu0 0.0
        %548 = vmatpush1.msra.mxu0 0.0
        %549 = vmatprep.subr.mxu0 0.0
        %550 = vmatpush1.msra.mxu0 0.0
        %551 = vmatprep.subr.mxu0 0.0
        %552 = vmatpush1.msra.mxu0 0.0
        %553 = vmatprep.subr.mxu0 0.0
        %554 = vmatpush1.msra.mxu0 0.0
        %555 = vmatprep.subr.mxu0 0.0
        %556 = vmatpush1.msra.mxu0 0.0
        %557 = vmatprep.subr.mxu0 0.0
        %558 = vmatpush1.msra.mxu0 0.0
        %559 = vmatprep.subr.mxu0 0.0
        %560 = vmatpush1.msra.mxu0 0.0
        %561 = vmatprep.subr.mxu0 0.0
        %562 = vmatpush1.msra.mxu0 0.0
        %563 = vmatprep.subr.mxu0 0.0
        %564 = vmatpush1.msra.mxu0 0.0
        %565 = vmatprep.mubr.f32.mxu0 0.0
        %566 = vmatmul.mubr.f32.gmra.mrb[0].mxu0 %v499
        %v567 = vpop.f32.mrb[0].mxu0
        %v568 = vadd.f32 %v497, %v567
        %v569 = vpop.f32.mrb[0].mxu0
        %570 = vdwg.mxu0
        %v571 = vxor.u32 %v568, 2147483648
        %v572 = vmul.f32 %v571, 1.442695
        %v573 = vpow.pop %v572
        %v574 = vadd.f32 %v573, 1.0
        %v575 = vrcp.pop %v574
        %v576 = vmul.f32 1.0, %v575
        %s577 = scalar_lea.vmem [#allocation6], 192
        %v578 = vld [vmem:[%s577] sm:$0xff]
        %v579 = vld [vmem:[%s577 + $0x8] sm:$0xff]
        %v580 = vld [vmem:[%s577 + $0x10] sm:$0xff]
        %v581 = vld [vmem:[%s577 + $0x18] sm:$0xff]
        %v582 = vld [vmem:[%s577 + $0x20] sm:$0xff]
        %v583 = vld [vmem:[%s577 + $0x28] sm:$0xff]
        %v584 = vld [vmem:[#allocation4 + $0x9] sm:$0x1]
        %v585 = vlaneseq
        %v586 = vshrl.u32 %v585, 7
        %v587 = vsub.s32 0, %v586
        %v588 = vrot.slane %v584, %v587
        %589 = vmatprep.subr.mxu0 0.0
        %590 = vmatpush1.msra.mxu0 %v578
        %591 = vmatprep.subr.mxu0 0.0
        %592 = vmatpush1.msra.mxu0 %v579
        %593 = vmatprep.subr.mxu0 0.0
        %594 = vmatpush1.msra.mxu0 %v580
        %595 = vmatprep.subr.mxu0 0.0
        %596 = vmatpush1.msra.mxu0 %v581
        %597 = vmatprep.subr.mxu0 0.0
        %598 = vmatpush1.msra.mxu0 %v582
        %599 = vmatprep.subr.mxu0 0.0
        %600 = vmatpush1.msra.mxu0 %v583
        %601 = vmatprep.subr.mxu0 0.0
        %602 = vmatpush1.msra.mxu0 0.0
        %603 = vmatprep.subr.mxu0 0.0
        %604 = vmatpush1.msra.mxu0 0.0
        %605 = vmatprep.subr.mxu0 0.0
        %606 = vmatpush1.msra.mxu0 0.0
        %607 = vmatprep.subr.mxu0 0.0
        %608 = vmatpush1.msra.mxu0 0.0
        %609 = vmatprep.subr.mxu0 0.0
        %610 = vmatpush1.msra.mxu0 0.0
        %611 = vmatprep.subr.mxu0 0.0
        %612 = vmatpush1.msra.mxu0 0.0
        %613 = vmatprep.subr.mxu0 0.0
        %614 = vmatpush1.msra.mxu0 0.0
        %615 = vmatprep.subr.mxu0 0.0
        %616 = vmatpush1.msra.mxu0 0.0
        %617 = vmatprep.subr.mxu0 0.0
        %618 = vmatpush1.msra.mxu0 0.0
        %619 = vmatprep.subr.mxu0 0.0
        %620 = vmatpush1.msra.mxu0 0.0
        %621 = vmatprep.subr.mxu0 0.0
        %622 = vmatpush1.msra.mxu0 0.0
        %623 = vmatprep.subr.mxu0 0.0
        %624 = vmatpush1.msra.mxu0 0.0
        %625 = vmatprep.subr.mxu0 0.0
        %626 = vmatpush1.msra.mxu0 0.0
        %627 = vmatprep.subr.mxu0 0.0
        %628 = vmatpush1.msra.mxu0 0.0
        %629 = vmatprep.subr.mxu0 0.0
        %630 = vmatpush1.msra.mxu0 0.0
        %631 = vmatprep.subr.mxu0 0.0
        %632 = vmatpush1.msra.mxu0 0.0
        %633 = vmatprep.subr.mxu0 0.0
        %634 = vmatpush1.msra.mxu0 0.0
        %635 = vmatprep.subr.mxu0 0.0
        %636 = vmatpush1.msra.mxu0 0.0
        %637 = vmatprep.subr.mxu0 0.0
        %638 = vmatpush1.msra.mxu0 0.0
        %639 = vmatprep.subr.mxu0 0.0
        %640 = vmatpush1.msra.mxu0 0.0
        %641 = vmatprep.subr.mxu0 0.0
        %642 = vmatpush1.msra.mxu0 0.0
        %643 = vmatprep.subr.mxu0 0.0
        %644 = vmatpush1.msra.mxu0 0.0
        %645 = vmatprep.subr.mxu0 0.0
        %646 = vmatpush1.msra.mxu0 0.0
        %647 = vmatprep.subr.mxu0 0.0
        %648 = vmatpush1.msra.mxu0 0.0
        %649 = vmatprep.subr.mxu0 0.0
        %650 = vmatpush1.msra.mxu0 0.0
        %651 = vmatprep.subr.mxu0 0.0
        %652 = vmatpush1.msra.mxu0 0.0
        %653 = vmatprep.mubr.f32.mxu0 0.0
        %654 = vmatmul.mubr.f32.gmra.mrb[0].mxu0 %v499
        %v655 = vpop.f32.mrb[0].mxu0
        %v656 = vadd.f32 %v588, %v655
        %v657 = vpop.f32.mrb[0].mxu0
        %658 = vdwg.mxu0
        %s659 = scalar_lea.vmem [#allocation6], 256
        %v660 = vld [vmem:[%s659] sm:$0xff]
        %v661 = vld [vmem:[%s659 + $0x8] sm:$0xff]
        %v662 = vld [vmem:[%s659 + $0x10] sm:$0xff]
        %v663 = vld [vmem:[%s659 + $0x18] sm:$0xff]
        %v664 = vld [vmem:[#allocation4 + $0xa] sm:$0x1]
        %v665 = vlaneseq
        %v666 = vshrl.u32 %v665, 7
        %v667 = vsub.s32 0, %v666
        %v668 = vrot.slane %v664, %v667
        %v670 = vsel %vm216, %v656, 0
        %672 = vmatprep.subr.mxu0 0.0
        %673 = vmatpush1.msra.mxu0 %v660
        %674 = vmatprep.subr.mxu0 0.0
        %675 = vmatpush1.msra.mxu0 %v661
        %676 = vmatprep.subr.mxu0 0.0
        %677 = vmatpush1.msra.mxu0 %v662
        %678 = vmatprep.subr.mxu0 0.0
        %679 = vmatpush1.msra.mxu0 %v663
        %680 = vmatprep.subr.mxu0 0.0
        %681 = vmatpush1.msra.mxu0 0.0
        %682 = vmatprep.subr.mxu0 0.0
        %683 = vmatpush1.msra.mxu0 0.0
        %684 = vmatprep.subr.mxu0 0.0
        %685 = vmatpush1.msra.mxu0 0.0
        %686 = vmatprep.subr.mxu0 0.0
        %687 = vmatpush1.msra.mxu0 0.0
        %688 = vmatprep.subr.mxu0 0.0
        %689 = vmatpush1.msra.mxu0 0.0
        %690 = vmatprep.subr.mxu0 0.0
        %691 = vmatpush1.msra.mxu0 0.0
        %692 = vmatprep.subr.mxu0 0.0
        %693 = vmatpush1.msra.mxu0 0.0
        %694 = vmatprep.subr.mxu0 0.0
        %695 = vmatpush1.msra.mxu0 0.0
        %696 = vmatprep.subr.mxu0 0.0
        %697 = vmatpush1.msra.mxu0 0.0
        %698 = vmatprep.subr.mxu0 0.0
        %699 = vmatpush1.msra.mxu0 0.0
        %700 = vmatprep.subr.mxu0 0.0
        %701 = vmatpush1.msra.mxu0 0.0
        %702 = vmatprep.subr.mxu0 0.0
        %703 = vmatpush1.msra.mxu0 0.0
        %704 = vmatprep.subr.mxu0 0.0
        %705 = vmatpush1.msra.mxu0 0.0
        %706 = vmatprep.subr.mxu0 0.0
        %707 = vmatpush1.msra.mxu0 0.0
        %708 = vmatprep.subr.mxu0 0.0
        %709 = vmatpush1.msra.mxu0 0.0
        %710 = vmatprep.subr.mxu0 0.0
        %711 = vmatpush1.msra.mxu0 0.0
        %712 = vmatprep.subr.mxu0 0.0
        %713 = vmatpush1.msra.mxu0 0.0
        %714 = vmatprep.subr.mxu0 0.0
        %715 = vmatpush1.msra.mxu0 0.0
        %716 = vmatprep.subr.mxu0 0.0
        %717 = vmatpush1.msra.mxu0 0.0
        %718 = vmatprep.subr.mxu0 0.0
        %719 = vmatpush1.msra.mxu0 0.0
        %720 = vmatprep.subr.mxu0 0.0
        %721 = vmatpush1.msra.mxu0 0.0
        %722 = vmatprep.subr.mxu0 0.0
        %723 = vmatpush1.msra.mxu0 0.0
        %724 = vmatprep.subr.mxu0 0.0
        %725 = vmatpush1.msra.mxu0 0.0
        %726 = vmatprep.subr.mxu0 0.0
        %727 = vmatpush1.msra.mxu0 0.0
        %728 = vmatprep.subr.mxu0 0.0
        %729 = vmatpush1.msra.mxu0 0.0
        %730 = vmatprep.subr.mxu0 0.0
        %731 = vmatpush1.msra.mxu0 0.0
        %732 = vmatprep.subr.mxu0 0.0
        %733 = vmatpush1.msra.mxu0 0.0
        %734 = vmatprep.subr.mxu0 0.0
        %735 = vmatpush1.msra.mxu0 0.0
        %736 = vmatprep.mubr.f32.mxu0 0.0
        %737 = vmatmul.mubr.f32.gmra.mrb[0].mxu0 %v670
        %v738 = vpop.f32.mrb[0].mxu0
        %v739 = vadd.f32 %v668, %v738
        %v740 = vpop.f32.mrb[0].mxu0
        %741 = vdwg.mxu0
        %v742 = vsel %vm450, %v739, 0.0
        %743 = vadd.xlane.f32.xlu0 %v742
        %v744 = vpop.xlane.xlu0 %743
        %v745 = vmul.f32 %v739, %v739
        %v746 = vsel %vm450, %v745, 0.0
        %747 = vadd.xlane.f32.xlu0 %v746
        %v748 = vpop.xlane.xlu0 %747
        %v749 = vmul.f32 %v744, %v458
        %v750 = vmul.f32 %v748, %v458
        %v751 = vmul.f32 %v749, %v749
        %v752 = vsub.f32 %v750, %v751
        %v753 = vsub.f32 %v739, %v749
        %v754 = vadd.f32 %v752, 1e-05
        %v755 = vrsqrt.pop %v754
        %v756 = vmul.f32 %v753, %v755
        %v757 = vld [vmem:[#allocation4 + $0xb] sm:$0x1]
        %v758 = vlaneseq
        %v759 = vshrl.u32 %v758, 7
        %v760 = vsub.s32 0, %v759
        %v761 = vrot.slane %v757, %v760
        %v762 = vmul.f32 %v756, %v761
        %v763 = vld [vmem:[#allocation4 + $0xc] sm:$0x1]
        %v764 = vlaneseq
        %v765 = vshrl.u32 %v764, 7
        %v766 = vsub.s32 0, %v765
        %v767 = vrot.slane %v763, %v766
        %v768 = vadd.f32 %v762, %v767
        %v769 = vxor.u32 %v768, 2147483648
        %v770 = vmul.f32 %v769, 1.442695
        %v771 = vpow.pop %v770
        %v772 = vadd.f32 %v771, 1.0
        %v773 = vrcp.pop %v772
        %v774 = vmul.f32 1.0, %v773
        %v775 = vmul.f32 %v768, %v774
        %s776 = scalar_lea.vmem [#allocation6], 320
        %v777 = vld [vmem:[%s776] sm:$0xff]
        %v778 = vld [vmem:[%s776 + $0x8] sm:$0xff]
        %v779 = vld [vmem:[%s776 + $0x10] sm:$0xff]
        %v780 = vld [vmem:[%s776 + $0x18] sm:$0xff]
        %v781 = vld [vmem:[%s776 + $0x20] sm:$0xff]
        %v782 = vld [vmem:[%s776 + $0x28] sm:$0xff]
        %v783 = vld [vmem:[#allocation4 + $0xd] sm:$0x1]
        %v784 = vlaneseq
        %v785 = vshrl.u32 %v784, 7
        %v786 = vsub.s32 0, %v785
        %v787 = vrot.slane %v783, %v786
        %v789 = vsel %vm450, %v775, 0
        %791 = vmatprep.subr.mxu0 0.0
        %792 = vmatpush1.msra.mxu0 %v777
        %793 = vmatprep.subr.mxu0 0.0
        %794 = vmatpush1.msra.mxu0 %v778
        %795 = vmatprep.subr.mxu0 0.0
        %796 = vmatpush1.msra.mxu0 %v779
        %797 = vmatprep.subr.mxu0 0.0
        %798 = vmatpush1.msra.mxu0 %v780
        %799 = vmatprep.subr.mxu0 0.0
        %800 = vmatpush1.msra.mxu0 %v781
        %801 = vmatprep.subr.mxu0 0.0
        %802 = vmatpush1.msra.mxu0 %v782
        %803 = vmatprep.subr.mxu0 0.0
        %804 = vmatpush1.msra.mxu0 0.0
        %805 = vmatprep.subr.mxu0 0.0
        %806 = vmatpush1.msra.mxu0 0.0
        %807 = vmatprep.subr.mxu0 0.0
        %808 = vmatpush1.msra.mxu0 0.0
        %809 = vmatprep.subr.mxu0 0.0
        %810 = vmatpush1.msra.mxu0 0.0
        %811 = vmatprep.subr.mxu0 0.0
        %812 = vmatpush1.msra.mxu0 0.0
        %813 = vmatprep.subr.mxu0 0.0
        %814 = vmatpush1.msra.mxu0 0.0
        %815 = vmatprep.subr.mxu0 0.0
        %816 = vmatpush1.msra.mxu0 0.0
        %817 = vmatprep.subr.mxu0 0.0
        %818 = vmatpush1.msra.mxu0 0.0
        %819 = vmatprep.subr.mxu0 0.0
        %820 = vmatpush1.msra.mxu0 0.0
        %821 = vmatprep.subr.mxu0 0.0
        %822 = vmatpush1.msra.mxu0 0.0
        %823 = vmatprep.subr.mxu0 0.0
        %824 = vmatpush1.msra.mxu0 0.0
        %825 = vmatprep.subr.mxu0 0.0
        %826 = vmatpush1.msra.mxu0 0.0
        %827 = vmatprep.subr.mxu0 0.0
        %828 = vmatpush1.msra.mxu0 0.0
        %829 = vmatprep.subr.mxu0 0.0
        %830 = vmatpush1.msra.mxu0 0.0
        %831 = vmatprep.subr.mxu0 0.0
        %832 = vmatpush1.msra.mxu0 0.0
        %833 = vmatprep.subr.mxu0 0.0
        %834 = vmatpush1.msra.mxu0 0.0
        %835 = vmatprep.subr.mxu0 0.0
        %836 = vmatpush1.msra.mxu0 0.0
        %837 = vmatprep.subr.mxu0 0.0
        %838 = vmatpush1.msra.mxu0 0.0
        %839 = vmatprep.subr.mxu0 0.0
        %840 = vmatpush1.msra.mxu0 0.0
        %841 = vmatprep.subr.mxu0 0.0
        %842 = vmatpush1.msra.mxu0 0.0
        %843 = vmatprep.subr.mxu0 0.0
        %844 = vmatpush1.msra.mxu0 0.0
        %845 = vmatprep.subr.mxu0 0.0
        %846 = vmatpush1.msra.mxu0 0.0
        %847 = vmatprep.subr.mxu0 0.0
        %848 = vmatpush1.msra.mxu0 0.0
        %849 = vmatprep.subr.mxu0 0.0
        %850 = vmatpush1.msra.mxu0 0.0
        %851 = vmatprep.subr.mxu0 0.0
        %852 = vmatpush1.msra.mxu0 0.0
        %853 = vmatprep.subr.mxu0 0.0
        %854 = vmatpush1.msra.mxu0 0.0
        %855 = vmatprep.mubr.f32.mxu0 0.0
        %856 = vmatmul.mubr.f32.gmra.mrb[0].mxu0 %v789
        %v857 = vpop.f32.mrb[0].mxu0
        %v858 = vadd.f32 %v787, %v857
        %v859 = vpop.f32.mrb[0].mxu0
        %860 = vdwg.mxu0
        %v861 = vxor.u32 %v858, 2147483648
        %v862 = vmul.f32 %v861, 1.442695
        %v863 = vpow.pop %v862
        %v864 = vadd.f32 %v863, 1.0
        %v865 = vrcp.pop %v864
        %v866 = vmul.f32 1.0, %v865
        %v867 = vsel %vm216, %v244, 0.0
        %868 = vadd.xlane.f32.xlu0 %v867
        %v869 = vpop.xlane.xlu0 %868
        %v870 = vsel %vm450, %v485, 0.0
        %871 = vadd.xlane.f32.xlu0 %v870
        %v872 = vpop.xlane.xlu0 %871
        %v873 = vadd.f32 %v869, %v872
        %v874 = vmul.f32 %v244, %v244
        %v875 = vsel %vm216, %v874, 0.0
        %876 = vadd.xlane.f32.xlu0 %v875
        %v877 = vpop.xlane.xlu0 %876
        %v878 = vmul.f32 %v485, %v485
        %v879 = vsel %vm450, %v878, 0.0
        %880 = vadd.xlane.f32.xlu0 %v879
        %v881 = vpop.xlane.xlu0 %880
        %v882 = vadd.f32 %v877, %v881
        %v883 = vrcp.pop 80.0
        %v884 = vmul.f32 %v873, %v883
        %v885 = vmul.f32 %v882, %v883
        %v886 = vmul.f32 %v884, %v884
        %v887 = vsub.f32 %v885, %v886
        %v888 = vadd.f32 %v887, 1e-05
        %v889 = vrsqrt.pop %v888
        %v890 = vsub.f32 %v244, %v884
        %v891 = vmul.f32 %v890, %v889
        %v892 = vld [vmem:[#allocation4 + $0xe] sm:$0x1]
        %v893 = vlaneseq
        %v894 = vshrl.u32 %v893, 7
        %v895 = vsub.s32 0, %v894
        %v896 = vrot.slane %v892, %v895
        %v897 = vmul.f32 %v891, %v896
        %v898 = vld [vmem:[#allocation4 + $0x10] sm:$0x1]
        %v899 = vlaneseq
        %v900 = vshrl.u32 %v899, 7
        %v901 = vsub.s32 0, %v900
        %v902 = vrot.slane %v898, %v901
        %v903 = vadd.f32 %v897, %v902
        %v904 = vsub.f32 %v485, %v884
        %v905 = vmul.f32 %v904, %v889
        %v906 = vld [vmem:[#allocation4 + $0xf] sm:$0x1]
        %v907 = vlaneseq
        %v908 = vshrl.u32 %v907, 7
        %v909 = vsub.s32 0, %v908
        %v910 = vrot.slane %v906, %v909
        %v911 = vmul.f32 %v905, %v910
        %v912 = vld [vmem:[#allocation4 + $0x11] sm:$0x1]
        %v913 = vlaneseq
        %v914 = vshrl.u32 %v913, 7
        %v915 = vsub.s32 0, %v914
        %v916 = vrot.slane %v912, %v915
        %v917 = vadd.f32 %v911, %v916
        %s918 = scalar_lea.vmem [#allocation6], 384
        %v919 = vld [vmem:[%s918] sm:$0xff]
        %v920 = vld [vmem:[%s918 + $0x8] sm:$0xff]
        %v921 = vld [vmem:[%s918 + $0x10] sm:$0xff]
        %v922 = vld [vmem:[%s918 + $0x18] sm:$0xff]
        %s923 = scalar_lea.vmem [#allocation6], 448
        %v924 = vld [vmem:[%s923] sm:$0xff]
        %v925 = vld [vmem:[%s923 + $0x8] sm:$0xff]
        %v926 = vld [vmem:[%s923 + $0x10] sm:$0xff]
        %v927 = vld [vmem:[%s923 + $0x18] sm:$0xff]
        %v928 = vld [vmem:[%s923 + $0x20] sm:$0xff]
        %v929 = vld [vmem:[%s923 + $0x28] sm:$0xff]
        %v931 = vsel %vm450, %v917, 0
        %933 = vmatprep.subr.mxu0 0.0
        %934 = vmatpush1.msra.mxu0 %v924
        %935 = vmatprep.subr.mxu0 0.0
        %936 = vmatpush1.msra.mxu0 %v925
        %937 = vmatprep.subr.mxu0 0.0
        %938 = vmatpush1.msra.mxu0 %v926
        %939 = vmatprep.subr.mxu0 0.0
        %940 = vmatpush1.msra.mxu0 %v927
        %941 = vmatprep.subr.mxu0 0.0
        %942 = vmatpush1.msra.mxu0 %v928
        %943 = vmatprep.subr.mxu0 0.0
        %944 = vmatpush1.msra.mxu0 %v929
        %945 = vmatprep.subr.mxu0 0.0
        %946 = vmatpush1.msra.mxu0 0.0
        %947 = vmatprep.subr.mxu0 0.0
        %948 = vmatpush1.msra.mxu0 0.0
        %949 = vmatprep.subr.mxu0 0.0
        %950 = vmatpush1.msra.mxu0 0.0
        %951 = vmatprep.subr.mxu0 0.0
        %952 = vmatpush1.msra.mxu0 0.0
        %953 = vmatprep.subr.mxu0 0.0
        %954 = vmatpush1.msra.mxu0 0.0
        %955 = vmatprep.subr.mxu0 0.0
        %956 = vmatpush1.msra.mxu0 0.0
        %957 = vmatprep.subr.mxu0 0.0
        %958 = vmatpush1.msra.mxu0 0.0
        %959 = vmatprep.subr.mxu0 0.0
        %960 = vmatpush1.msra.mxu0 0.0
        %961 = vmatprep.subr.mxu0 0.0
        %962 = vmatpush1.msra.mxu0 0.0
        %963 = vmatprep.subr.mxu0 0.0
        %964 = vmatpush1.msra.mxu0 0.0
        %965 = vmatprep.subr.mxu0 0.0
        %966 = vmatpush1.msra.mxu0 0.0
        %967 = vmatprep.subr.mxu0 0.0
        %968 = vmatpush1.msra.mxu0 0.0
        %969 = vmatprep.subr.mxu0 0.0
        %970 = vmatpush1.msra.mxu0 0.0
        %971 = vmatprep.subr.mxu0 0.0
        %972 = vmatpush1.msra.mxu0 0.0
        %973 = vmatprep.subr.mxu0 0.0
        %974 = vmatpush1.msra.mxu0 0.0
        %975 = vmatprep.subr.mxu0 0.0
        %976 = vmatpush1.msra.mxu0 0.0
        %977 = vmatprep.subr.mxu0 0.0
        %978 = vmatpush1.msra.mxu0 0.0
        %979 = vmatprep.subr.mxu0 0.0
        %980 = vmatpush1.msra.mxu0 0.0
        %981 = vmatprep.subr.mxu0 0.0
        %982 = vmatpush1.msra.mxu0 0.0
        %983 = vmatprep.subr.mxu0 0.0
        %984 = vmatpush1.msra.mxu0 0.0
        %985 = vmatprep.subr.mxu0 0.0
        %986 = vmatpush1.msra.mxu0 0.0
        %987 = vmatprep.subr.mxu0 0.0
        %988 = vmatpush1.msra.mxu0 0.0
        %989 = vmatprep.subr.mxu0 0.0
        %990 = vmatpush1.msra.mxu0 0.0
        %991 = vmatprep.subr.mxu0 0.0
        %992 = vmatpush1.msra.mxu0 0.0
        %993 = vmatprep.subr.mxu0 0.0
        %994 = vmatpush1.msra.mxu0 0.0
        %995 = vmatprep.subr.mxu0 0.0
        %996 = vmatpush1.msra.mxu0 0.0
        %997 = vmatprep.mubr.f32.mxu0 0.0
        %998 = vmatmul.mubr.f32.gmra.mrb[0].mxu0 %v931
        %v999 = vpop.f32.mrb[0].mxu0
        %v1000 = vadd.f32 0.0, %v999
        %v1001 = vpop.f32.mrb[0].mxu0
        %1002 = vdwg.mxu0
        %v1004 = vsel %vm216, %v903, 0
        %1006 = vmatprep.subr.mxu0 0.0
        %1007 = vmatpush1.msra.mxu0 %v919
        %1008 = vmatprep.subr.mxu0 0.0
        %1009 = vmatpush1.msra.mxu0 %v920
        %1010 = vmatprep.subr.mxu0 0.0
        %1011 = vmatpush1.msra.mxu0 %v921
        %1012 = vmatprep.subr.mxu0 0.0
        %1013 = vmatpush1.msra.mxu0 %v922
        %1014 = vmatprep.subr.mxu0 0.0
        %1015 = vmatpush1.msra.mxu0 0.0
        %1016 = vmatprep.subr.mxu0 0.0
        %1017 = vmatpush1.msra.mxu0 0.0
        %1018 = vmatprep.subr.mxu0 0.0
        %1019 = vmatpush1.msra.mxu0 0.0
        %1020 = vmatprep.subr.mxu0 0.0
        %1021 = vmatpush1.msra.mxu0 0.0
        %1022 = vmatprep.subr.mxu0 0.0
        %1023 = vmatpush1.msra.mxu0 0.0
        %1024 = vmatprep.subr.mxu0 0.0
        %1025 = vmatpush1.msra.mxu0 0.0
        %1026 = vmatprep.subr.mxu0 0.0
        %1027 = vmatpush1.msra.mxu0 0.0
        %1028 = vmatprep.subr.mxu0 0.0
        %1029 = vmatpush1.msra.mxu0 0.0
        %1030 = vmatprep.subr.mxu0 0.0
        %1031 = vmatpush1.msra.mxu0 0.0
        %1032 = vmatprep.subr.mxu0 0.0
        %1033 = vmatpush1.msra.mxu0 0.0
        %1034 = vmatprep.subr.mxu0 0.0
        %1035 = vmatpush1.msra.mxu0 0.0
        %1036 = vmatprep.subr.mxu0 0.0
        %1037 = vmatpush1.msra.mxu0 0.0
        %1038 = vmatprep.subr.mxu0 0.0
        %1039 = vmatpush1.msra.mxu0 0.0
        %1040 = vmatprep.subr.mxu0 0.0
        %1041 = vmatpush1.msra.mxu0 0.0
        %1042 = vmatprep.subr.mxu0 0.0
        %1043 = vmatpush1.msra.mxu0 0.0
        %1044 = vmatprep.subr.mxu0 0.0
        %1045 = vmatpush1.msra.mxu0 0.0
        %1046 = vmatprep.subr.mxu0 0.0
        %1047 = vmatpush1.msra.mxu0 0.0
        %1048 = vmatprep.subr.mxu0 0.0
        %1049 = vmatpush1.msra.mxu0 0.0
        %1050 = vmatprep.subr.mxu0 0.0
        %1051 = vmatpush1.msra.mxu0 0.0
        %1052 = vmatprep.subr.mxu0 0.0
        %1053 = vmatpush1.msra.mxu0 0.0
        %1054 = vmatprep.subr.mxu0 0.0
        %1055 = vmatpush1.msra.mxu0 0.0
        %1056 = vmatprep.subr.mxu0 0.0
        %1057 = vmatpush1.msra.mxu0 0.0
        %1058 = vmatprep.subr.mxu0 0.0
        %1059 = vmatpush1.msra.mxu0 0.0
        %1060 = vmatprep.subr.mxu0 0.0
        %1061 = vmatpush1.msra.mxu0 0.0
        %1062 = vmatprep.subr.mxu0 0.0
        %1063 = vmatpush1.msra.mxu0 0.0
        %1064 = vmatprep.subr.mxu0 0.0
        %1065 = vmatpush1.msra.mxu0 0.0
        %1066 = vmatprep.subr.mxu0 0.0
        %1067 = vmatpush1.msra.mxu0 0.0
        %1068 = vmatprep.subr.mxu0 0.0
        %1069 = vmatpush1.msra.mxu0 0.0
        %1070 = vmatprep.mubr.f32.mxu0 0.0
        %1071 = vmatmul.mubr.f32.gmra.mrb[0].mxu0 %v1004
        %v1072 = vpop.f32.mrb[0].mxu0
        %v1073 = vadd.f32 %v1000, %v1072
        %v1074 = vpop.f32.mrb[0].mxu0
        %1075 = vdwg.mxu0
        %v1076 = vld [vmem:[#allocation4 + $0x12] sm:$0x1]
        %v1077 = vlaneseq
        %v1078 = vshrl.u32 %v1077, 7
        %v1079 = vsub.s32 0, %v1078
        %v1080 = vrot.slane %v1076, %v1079
        %v1081 = vadd.f32 %v1073, %v1080
        %vm1082 = vcmask 326656
        %v1083 = vsel %vm1082, %v1081, 0.0
        %1084 = vadd.xlane.f32.xlu0 %v1083
        %v1085 = vpop.xlane.xlu0 %1084
        %v1086 = vmul.f32 %v1081, %v1081
        %v1087 = vsel %vm1082, %v1086, 0.0
        %1088 = vadd.xlane.f32.xlu0 %v1087
        %v1089 = vpop.xlane.xlu0 %1088
        %v1090 = vrcp.pop 40.0
        %v1091 = vmul.f32 %v1085, %v1090
        %v1092 = vmul.f32 %v1089, %v1090
        %v1093 = vmul.f32 %v1091, %v1091
        %v1094 = vsub.f32 %v1092, %v1093
        %v1095 = vsub.f32 %v1081, %v1091
        %v1096 = vadd.f32 %v1094, 1e-05
        %v1097 = vrsqrt.pop %v1096
        %v1098 = vmul.f32 %v1095, %v1097
        %v1099 = vld [vmem:[#allocation4 + $0x13] sm:$0x1]
        %v1100 = vlaneseq
        %v1101 = vshrl.u32 %v1100, 7
        %v1102 = vsub.s32 0, %v1101
        %v1103 = vrot.slane %v1099, %v1102
        %v1104 = vmul.f32 %v1098, %v1103
        %v1105 = vld [vmem:[#allocation4 + $0x14] sm:$0x1]
        %v1106 = vlaneseq
        %v1107 = vshrl.u32 %v1106, 7
        %v1108 = vsub.s32 0, %v1107
        %v1109 = vrot.slane %v1105, %v1108
        %v1110 = vadd.f32 %v1104, %v1109
        %v1111 = vxor.u32 %v1110, 2147483648
        %v1112 = vmul.f32 %v1111, 1.442695
        %v1113 = vpow.pop %v1112
        %v1114 = vadd.f32 %v1113, 1.0
        %v1115 = vrcp.pop %v1114
        %v1116 = vmul.f32 1.0, %v1115
        %v1117 = vmul.f32 %v1110, %v1116
        %s1118 = scalar_lea.vmem [#allocation6], 512
        %v1119 = vld [vmem:[%s1118] sm:$0xff]
        %v1120 = vld [vmem:[%s1118 + $0x8] sm:$0xff]
        %v1121 = vld [vmem:[%s1118 + $0x10] sm:$0xff]
        %v1122 = vld [vmem:[%s1118 + $0x18] sm:$0xff]
        %v1123 = vld [vmem:[%s1118 + $0x20] sm:$0xff]
        %v1124 = vld [vmem:[#allocation4 + $0x15] sm:$0x1]
        %v1125 = vlaneseq
        %v1126 = vshrl.u32 %v1125, 7
        %v1127 = vsub.s32 0, %v1126
        %v1128 = vrot.slane %v1124, %v1127
        %v1130 = vsel %vm1082, %v1117, 0
        %1132 = vmatprep.subr.mxu0 0.0
        %1133 = vmatpush1.msra.mxu0 %v1119
        %1134 = vmatprep.subr.mxu0 0.0
        %1135 = vmatpush1.msra.mxu0 %v1120
        %1136 = vmatprep.subr.mxu0 0.0
        %1137 = vmatpush1.msra.mxu0 %v1121
        %1138 = vmatprep.subr.mxu0 0.0
        %1139 = vmatpush1.msra.mxu0 %v1122
        %1140 = vmatprep.subr.mxu0 0.0
        %1141 = vmatpush1.msra.mxu0 %v1123
        %1142 = vmatprep.subr.mxu0 0.0
        %1143 = vmatpush1.msra.mxu0 0.0
        %1144 = vmatprep.subr.mxu0 0.0
        %1145 = vmatpush1.msra.mxu0 0.0
        %1146 = vmatprep.subr.mxu0 0.0
        %1147 = vmatpush1.msra.mxu0 0.0
        %1148 = vmatprep.subr.mxu0 0.0
        %1149 = vmatpush1.msra.mxu0 0.0
        %1150 = vmatprep.subr.mxu0 0.0
        %1151 = vmatpush1.msra.mxu0 0.0
        %1152 = vmatprep.subr.mxu0 0.0
        %1153 = vmatpush1.msra.mxu0 0.0
        %1154 = vmatprep.subr.mxu0 0.0
        %1155 = vmatpush1.msra.mxu0 0.0
        %1156 = vmatprep.subr.mxu0 0.0
        %1157 = vmatpush1.msra.mxu0 0.0
        %1158 = vmatprep.subr.mxu0 0.0
        %1159 = vmatpush1.msra.mxu0 0.0
        %1160 = vmatprep.subr.mxu0 0.0
        %1161 = vmatpush1.msra.mxu0 0.0
        %1162 = vmatprep.subr.mxu0 0.0
        %1163 = vmatpush1.msra.mxu0 0.0
        %1164 = vmatprep.subr.mxu0 0.0
        %1165 = vmatpush1.msra.mxu0 0.0
        %1166 = vmatprep.subr.mxu0 0.0
        %1167 = vmatpush1.msra.mxu0 0.0
        %1168 = vmatprep.subr.mxu0 0.0
        %1169 = vmatpush1.msra.mxu0 0.0
        %1170 = vmatprep.subr.mxu0 0.0
        %1171 = vmatpush1.msra.mxu0 0.0
        %1172 = vmatprep.subr.mxu0 0.0
        %1173 = vmatpush1.msra.mxu0 0.0
        %1174 = vmatprep.subr.mxu0 0.0
        %1175 = vmatpush1.msra.mxu0 0.0
        %1176 = vmatprep.subr.mxu0 0.0
        %1177 = vmatpush1.msra.mxu0 0.0
        %1178 = vmatprep.subr.mxu0 0.0
        %1179 = vmatpush1.msra.mxu0 0.0
        %1180 = vmatprep.subr.mxu0 0.0
        %1181 = vmatpush1.msra.mxu0 0.0
        %1182 = vmatprep.subr.mxu0 0.0
        %1183 = vmatpush1.msra.mxu0 0.0
        %1184 = vmatprep.subr.mxu0 0.0
        %1185 = vmatpush1.msra.mxu0 0.0
        %1186 = vmatprep.subr.mxu0 0.0
        %1187 = vmatpush1.msra.mxu0 0.0
        %1188 = vmatprep.subr.mxu0 0.0
        %1189 = vmatpush1.msra.mxu0 0.0
        %1190 = vmatprep.subr.mxu0 0.0
        %1191 = vmatpush1.msra.mxu0 0.0
        %1192 = vmatprep.subr.mxu0 0.0
        %1193 = vmatpush1.msra.mxu0 0.0
        %1194 = vmatprep.subr.mxu0 0.0
        %1195 = vmatpush1.msra.mxu0 0.0
        %1196 = vmatprep.mubr.f32.mxu0 0.0
        %1197 = vmatmul.mubr.f32.gmra.mrb[0].mxu0 %v1130
        %v1198 = vpop.f32.mrb[0].mxu0
        %v1199 = vadd.f32 %v1128, %v1198
        %v1200 = vpop.f32.mrb[0].mxu0
        %1201 = vdwg.mxu0
        %vm1202 = vcmask 195584
        %v1203 = vsel %vm1202, %v1199, 0.0
        %1204 = vadd.xlane.f32.xlu0 %v1203
        %v1205 = vpop.xlane.xlu0 %1204
        %v1206 = vmul.f32 %v1199, %v1199
        %v1207 = vsel %vm1202, %v1206, 0.0
        %1208 = vadd.xlane.f32.xlu0 %v1207
        %v1209 = vpop.xlane.xlu0 %1208
        %v1210 = vrcp.pop 24.0
        %v1211 = vmul.f32 %v1205, %v1210
        %v1212 = vmul.f32 %v1209, %v1210
        %v1213 = vmul.f32 %v1211, %v1211
        %v1214 = vsub.f32 %v1212, %v1213
        %v1215 = vsub.f32 %v1199, %v1211
        %v1216 = vadd.f32 %v1214, 1e-05
        %v1217 = vrsqrt.pop %v1216
        %v1218 = vmul.f32 %v1215, %v1217
        %v1219 = vld [vmem:[#allocation4 + $0x16] sm:$0x1]
        %v1220 = vlaneseq
        %v1221 = vshrl.u32 %v1220, 7
        %v1222 = vsub.s32 0, %v1221
        %v1223 = vrot.slane %v1219, %v1222
        %v1224 = vmul.f32 %v1218, %v1223
        %v1225 = vld [vmem:[#allocation4 + $0x17] sm:$0x1]
        %v1226 = vlaneseq
        %v1227 = vshrl.u32 %v1226, 7
        %v1228 = vsub.s32 0, %v1227
        %v1229 = vrot.slane %v1225, %v1228
        %v1230 = vadd.f32 %v1224, %v1229
        %v1231 = vxor.u32 %v1230, 2147483648
        %v1232 = vmul.f32 %v1231, 1.442695
        %v1233 = vpow.pop %v1232
        %v1234 = vadd.f32 %v1233, 1.0
        %v1235 = vrcp.pop %v1234
        %v1236 = vmul.f32 1.0, %v1235
        %v1237 = vmul.f32 %v1230, %v1236
        %s1238 = scalar_lea.vmem [#allocation6], 576
        %v1239 = vld [vmem:[%s1238] sm:$0xff]
        %v1240 = vld [vmem:[%s1238 + $0x8] sm:$0xff]
        %v1241 = vld [vmem:[%s1238 + $0x10] sm:$0xff]
        %v1242 = vld [vmem:[#allocation4 + $0x18] sm:$0x1]
        %v1243 = vlaneseq
        %v1244 = vshrl.u32 %v1243, 7
        %v1245 = vsub.s32 0, %v1244
        %v1246 = vrot.slane %v1242, %v1245
        %v1248 = vsel %vm1202, %v1237, 0
        %1250 = vmatprep.subr.mxu0 0.0
        %1251 = vmatpush1.msra.mxu0 %v1239
        %1252 = vmatprep.subr.mxu0 0.0
        %1253 = vmatpush1.msra.mxu0 %v1240
        %1254 = vmatprep.subr.mxu0 0.0
        %1255 = vmatpush1.msra.mxu0 %v1241
        %1256 = vmatprep.subr.mxu0 0.0
        %1257 = vmatpush1.msra.mxu0 0.0
        %1258 = vmatprep.subr.mxu0 0.0
        %1259 = vmatpush1.msra.mxu0 0.0
        %1260 = vmatprep.subr.mxu0 0.0
        %1261 = vmatpush1.msra.mxu0 0.0
        %1262 = vmatprep.subr.mxu0 0.0
        %1263 = vmatpush1.msra.mxu0 0.0
        %1264 = vmatprep.subr.mxu0 0.0
        %1265 = vmatpush1.msra.mxu0 0.0
        %1266 = vmatprep.subr.mxu0 0.0
        %1267 = vmatpush1.msra.mxu0 0.0
        %1268 = vmatprep.subr.mxu0 0.0
        %1269 = vmatpush1.msra.mxu0 0.0
        %1270 = vmatprep.subr.mxu0 0.0
        %1271 = vmatpush1.msra.mxu0 0.0
        %1272 = vmatprep.subr.mxu0 0.0
        %1273 = vmatpush1.msra.mxu0 0.0
        %1274 = vmatprep.subr.mxu0 0.0
        %1275 = vmatpush1.msra.mxu0 0.0
        %1276 = vmatprep.subr.mxu0 0.0
        %1277 = vmatpush1.msra.mxu0 0.0
        %1278 = vmatprep.subr.mxu0 0.0
        %1279 = vmatpush1.msra.mxu0 0.0
        %1280 = vmatprep.subr.mxu0 0.0
        %1281 = vmatpush1.msra.mxu0 0.0
        %1282 = vmatprep.subr.mxu0 0.0
        %1283 = vmatpush1.msra.mxu0 0.0
        %1284 = vmatprep.subr.mxu0 0.0
        %1285 = vmatpush1.msra.mxu0 0.0
        %1286 = vmatprep.subr.mxu0 0.0
        %1287 = vmatpush1.msra.mxu0 0.0
        %1288 = vmatprep.subr.mxu0 0.0
        %1289 = vmatpush1.msra.mxu0 0.0
        %1290 = vmatprep.subr.mxu0 0.0
        %1291 = vmatpush1.msra.mxu0 0.0
        %1292 = vmatprep.subr.mxu0 0.0
        %1293 = vmatpush1.msra.mxu0 0.0
        %1294 = vmatprep.subr.mxu0 0.0
        %1295 = vmatpush1.msra.mxu0 0.0
        %1296 = vmatprep.subr.mxu0 0.0
        %1297 = vmatpush1.msra.mxu0 0.0
        %1298 = vmatprep.subr.mxu0 0.0
        %1299 = vmatpush1.msra.mxu0 0.0
        %1300 = vmatprep.subr.mxu0 0.0
        %1301 = vmatpush1.msra.mxu0 0.0
        %1302 = vmatprep.subr.mxu0 0.0
        %1303 = vmatpush1.msra.mxu0 0.0
        %1304 = vmatprep.subr.mxu0 0.0
        %1305 = vmatpush1.msra.mxu0 0.0
        %1306 = vmatprep.subr.mxu0 0.0
        %1307 = vmatpush1.msra.mxu0 0.0
        %1308 = vmatprep.subr.mxu0 0.0
        %1309 = vmatpush1.msra.mxu0 0.0
        %1310 = vmatprep.subr.mxu0 0.0
        %1311 = vmatpush1.msra.mxu0 0.0
        %1312 = vmatprep.subr.mxu0 0.0
        %1313 = vmatpush1.msra.mxu0 0.0
        %1314 = vmatprep.mubr.f32.mxu0 0.0
        %1315 = vmatmul.mubr.f32.gmra.mrb[0].mxu0 %v1248
        %v1316 = vpop.f32.mrb[0].mxu0
        %v1317 = vadd.f32 %v1246, %v1316
        %v1318 = vpop.f32.mrb[0].mxu0
        %1319 = vdwg.mxu0
        %v1320 = vxor.u32 %v1317, 2147483648
        %v1321 = vmul.f32 %v1320, 1.442695
        %v1322 = vpow.pop %v1321
        %v1323 = vadd.f32 %v1322, 1.0
        %v1324 = vrcp.pop %v1323
        %v1325 = vmul.f32 1.0, %v1324
        %1326 = vrot.lane.b32.xlu0 %v656, 5
        %v1327 = vpop.permute.xlu0 %1326
        %1330 = vrot.lane.b32.xlu0 %v866, 37
        %v1331 = vpop.permute.xlu0 %1330
        %1334 = vrot.lane.b32.xlu0 %v1325, 42
        %v1335 = vpop.permute.xlu0 %1334
        %vm1337 = vcmask 39936
        %v1338 = vsel %vm1337, %v576, %v1327
        %vm1339 = vcmask 302080
        %v1340 = vsel %vm1339, %v1338, %v1331
        %vm1341 = vcmask 343040
        %v1342 = vsel %vm1341, %v1340, %v1335
        %vm1343 = vcmask 384000
        %v1344 = vsel %vm1343, %v1342, 0.0
        %1345 = vst [vmem:[%s214] sm:$0xff] %v1344
        %p1346 = scmp.lt.s32.totalorder %s18, 1
        %s1347 = scalar_select %p1346, %s18, 1
        %s1348 = smul.addr %s1347, 8
        %s1349 = scalar_lea.vmem %s3, %s1348
        // Predicated region
        $region45: #{forward.1} parent=31 // pred_check
          %p1350 = pneg %p104
        $region46: #{forward.1} parent=31 // pred_check_branch
          %1352 = sbr.rel (%p1350) target = $region48
        $region47: #{forward.1} parent=31 // pred_region
          _
        $region48: #{forward.1} parent=31 // pred_fallthru
          _
      $region32: #{forward.1} parent=5 // pred_fallthru
        _
      %p1353 = scmp.le.s32.totalorder 2, %s13
      // Predicated region
      $region49: #{forward.1} parent=5 // pred_check
        %p1354 = pneg %p1353
      $region50: #{forward.1} parent=5 // pred_check_branch
        %1356 = sbr.rel (%p1354) target = $region52
      $region51: #{forward.1} parent=5 // pred_region
        %s1357 = ssub.s32 %s13, 2
        // Predicated region
        $region53: #{forward.1} parent=51 // pred_check
          %p1358 = pneg %p110
        $region54: #{forward.1} parent=51 // pred_check_branch
          %1360 = sbr.rel (%p1358) target = $region56
        $region55: #{forward.1} parent=51 // pred_region
          %p1361 = scmp.lt.s32.totalorder %s19, 1
          %s1362 = scalar_select %p1361, %s19, 1
          %s1363 = smul.addr %s1362, 8
          %s1364 = scalar_lea.vmem %s3, %s1363
        $region56: #{forward.1} parent=51 // pred_fallthru
          _
      $region52: #{forward.1} parent=5 // pred_fallthru
        _
    $region6: #{forward.1} parent=1 // loop_footer
      %s17 = sadd.s32 1, %s13
    $region7: #{forward.1} parent=1 // loop_footer_branch
      %12 = sbr.rel target = $region3
    $region8: #{forward.1} parent=1 // loop_exit
      _
    %1365 = vsyncpa [#allocation3], 1
    %s1366 = scalar_lea.sflag [#allocation3], 1
    %1367 = vsyncpa %s1366, 1
    %1368 = vsyncpa [#allocation5], 1

</llo_original>
